<compile_context>
chip_gen: v7x
topology: tpu7x:2x2x1
jax: 0.10.0
libtpu: 0.0.40
codegen_flags: <defaults>
</compile_context>

<pallas_src>
import functools

import jax
import jax.numpy as jnp
from jax.experimental import pallas as pl
from jax.experimental.pallas import tpu as pltpu


def _block_kernel(x_ref, gamma_ref, beta_ref, avg_ref, mask_ref, w_ref,
                  bias_ref, *rest, H, W, C, Cout, G, eps, has_scale_shift):
    if has_scale_shift:
        scale_ref, shift_ref, o_ref = rest
    else:
        (o_ref,) = rest
        scale_ref = shift_ref = None

    HW = H * W
    cpg = C // G
    inv_n = 1.0 / float(HW * cpg)

    # ---- GroupNorm (two-pass, f32) -----------------------------------------
    x = x_ref[0].astype(jnp.float32)                          # (C, HW)

    ch_sum = jnp.sum(x, axis=1, keepdims=True)                # (C, 1) exact f32
    mean_c = jnp.dot(avg_ref[...], ch_sum,
                     precision=jax.lax.Precision.HIGHEST,
                     preferred_element_type=jnp.float32) * inv_n   # (C, 1)
    xm = x - mean_c
    ch_sq = jnp.sum(xm * xm, axis=1, keepdims=True)           # (C, 1)
    var_c = jnp.dot(avg_ref[...], ch_sq,
                    precision=jax.lax.Precision.HIGHEST,
                    preferred_element_type=jnp.float32) * inv_n    # (C, 1)

    inv = jax.lax.rsqrt(var_c + eps)
    xn = xm * (inv * gamma_ref[...]) + beta_ref[...]          # (C, HW)

    # ---- optional scale/shift (statically specialized) -----------------------
    if has_scale_shift:
        xn = xn * (scale_ref[0] + 1.0) + shift_ref[0]

    # ---- SiLU (f32, EUP sigmoid) ---------------------------------------------
    a = xn * jax.nn.sigmoid(xn)                               # (C, HW) f32

    # ---- 3x3 same conv: roll-based shifts + 3 accumulating dots --------------
    not_last_col = mask_ref[0:1, :]      # 0 where w == W-1 (source of kw=0 taps)
    not_first_col = mask_ref[1:2, :]     # 0 where w == 0   (source of kw=2 taps)
    not_first_row = mask_ref[2:3, :]     # 0 where h == 0   (dest of kh=0 taps)
    not_last_row = mask_ref[3:4, :]      # 0 where h == H-1 (dest of kh=2 taps)

    # kw-shifted, column-masked pieces.  roll(x, s)[j] == x[j - s], so shift=+1
    # reads the left neighbour (w-1) and shift=HW-1 reads the right neighbour.
    q_left = pltpu.roll(a * not_last_col, shift=1, axis=1)          # a[h, w-1]
    q_right = pltpu.roll(a * not_first_col, shift=HW - 1, axis=1)   # a[h, w+1]
    q = jnp.concatenate([q_left, a, q_right], axis=0)               # (3C, HW) f32

    acc = jnp.dot(w_ref[1], q.astype(jnp.bfloat16),
                  preferred_element_type=jnp.float32)               # kh = 1
    top = pltpu.roll(q, shift=W, axis=1) * not_first_row            # row h-1
    acc = acc + jnp.dot(w_ref[0], top.astype(jnp.bfloat16),
                        preferred_element_type=jnp.float32)         # kh = 0
    bot = pltpu.roll(q, shift=HW - W, axis=1) * not_last_row        # row h+1
    acc = acc + jnp.dot(w_ref[2], bot.astype(jnp.bfloat16),
                        preferred_element_type=jnp.float32)         # kh = 2

    o_ref[0] = (acc + bias_ref[...]).astype(o_ref.dtype)


def _vmem_limit_bytes(C, HW, Cout, x_bytes, out_bytes, has_ss):
    """Derive a VMEM limit from the actual block sizes (v7x-safe)."""
    # Double-buffered pipeline blocks per grid step.
    io = 2 * (C * HW * x_bytes + Cout * HW * out_bytes
              + (2 * C * 4 if has_ss else 0))
    # Grid-invariant inputs (counted twice to cover Pallas buffering).
    params = 2 * (3 * Cout * 3 * C * 2 + 4 * HW * 4 + C * C * 4
                  + 2 * C * 4 + Cout * 4)
    # In-kernel temporaries: x/xn/a + masked copies (f32), q + 2 rolled copies
    # (f32), their bf16 casts, and the f32 accumulator.
    tmp = ((5 * C + 3 * 3 * C + 2 * Cout) * HW * 4
           + 3 * (3 * C) * HW * 2)
    est = int(1.5 * (io + params + tmp)) + (4 << 20)
    return int(max(16 << 20, min(est, 100 << 20)))


def block_forward(x_nchw, gamma, beta, w_oihw, bias, scale_shift=None,
                  *, groups=8, eps=1e-5, out_dtype=None):
    """Pallas equivalent of Block.forward.

    x_nchw : (B, C, H, W) float (f32 or bf16)
    gamma, beta : (C,) GroupNorm affine
    w_oihw : (Cout, Cin, 3, 3) conv weight, bias : (Cout,)
    scale_shift : optional tuple of (B, C) arrays (per-batch, per-channel)
    returns (B, Cout, H, W) in out_dtype (defaults to x dtype)
    """
    B, C, H, W = x_nchw.shape
    Cout = w_oihw.shape[0]
    G = groups
    HW = H * W
    cpg = C // G
    if out_dtype is None:
        out_dtype = x_nchw.dtype

    # Free reshape only: stay in the NCHW-derived layout (no HBM transposes).
    x2 = x_nchw.reshape(B, C, HW)

    gamma2 = gamma.reshape(C, 1).astype(jnp.float32)
    beta2 = beta.reshape(C, 1).astype(jnp.float32)

    # (C, C) group-membership matrix (1 within a group), hoisted.
    grp = jnp.arange(C, dtype=jnp.int32) // cpg
    avg = (grp[:, None] == grp[None, :]).astype(jnp.float32)

    # Hoisted conv boundary masks: column masks (applied to roll sources) and
    # row masks (applied to roll destinations, since roll wraps around).
    pos = jnp.arange(HW, dtype=jnp.int32)
    wpos = pos % W
    hpos = pos // W
    masks = jnp.stack([
        (wpos != W - 1).astype(jnp.float32),
        (wpos != 0).astype(jnp.float32),
        (hpos != 0).astype(jnp.float32),
        (hpos != H - 1).astype(jnp.float32),
    ], axis=0)                                                # (4, HW)

    # Conv weights: (Cout, Cin, 3, 3) -> (KH, Cout, KW*Cin), bf16 for the MXU.
    # w3[kh, o, kw*C + c] == w_oihw[o, c, kh, kw], matching q's row order.
    w3 = jnp.transpose(w_oihw, (2, 0, 3, 1)).reshape(
        3, Cout, 3 * C).astype(jnp.bfloat16)
    bias2 = bias.reshape(Cout, 1).astype(jnp.float32)

    inputs = [x2, gamma2, beta2, avg, masks, w3, bias2]
    in_specs = [
        pl.BlockSpec((1, C, HW), lambda b: (b, 0, 0)),        # x
        pl.BlockSpec((C, 1), lambda b: (0, 0)),               # gamma
        pl.BlockSpec((C, 1), lambda b: (0, 0)),               # beta
        pl.BlockSpec((C, C), lambda b: (0, 0)),               # group membership
        pl.BlockSpec((4, HW), lambda b: (0, 0)),              # boundary masks
        pl.BlockSpec((3, Cout, 3 * C), lambda b: (0, 0, 0)),  # conv weights
        pl.BlockSpec((Cout, 1), lambda b: (0, 0)),            # conv bias
    ]

    has_ss = scale_shift is not None
    if has_ss:
        sc = scale_shift[0].reshape(B, C, 1).astype(jnp.float32)
        sh = scale_shift[1].reshape(B, C, 1).astype(jnp.float32)
        inputs += [sc, sh]
        in_specs += [pl.BlockSpec((1, C, 1), lambda b: (b, 0, 0)),
                     pl.BlockSpec((1, C, 1), lambda b: (b, 0, 0))]

    kernel = functools.partial(_block_kernel, H=H, W=W, C=C, Cout=Cout, G=G,
                               eps=eps, has_scale_shift=has_ss)

    x_bytes = jnp.dtype(x2.dtype).itemsize
    out_bytes = jnp.dtype(out_dtype).itemsize

    out = pl.pallas_call(
        kernel,
        out_shape=jax.ShapeDtypeStruct((B, Cout, HW), out_dtype),
        grid=(B,),
        in_specs=in_specs,
        out_specs=pl.BlockSpec((1, Cout, HW), lambda b: (b, 0, 0)),
        compiler_params=pltpu.CompilerParams(
            dimension_semantics=("parallel",),
            vmem_limit_bytes=_vmem_limit_bytes(C, HW, Cout, x_bytes,
                                               out_bytes, has_ss)),
    )(*inputs)

    # Free reshape back to NCHW.
    return out.reshape(B, Cout, H, W)


def _reference_forward(x_nchw, gamma, beta, w_oihw, bias, scale_shift,
                       *, groups=8, eps=1e-5):
    """Pure-JAX reference matching torch semantics (f32)."""
    B, C, H, W = x_nchw.shape
    G = groups
    xg = x_nchw.astype(jnp.float32).reshape(B, G, -1)
    mean = jnp.mean(xg, axis=-1, keepdims=True)
    var = jnp.mean((xg - mean) ** 2, axis=-1, keepdims=True)
    xn = ((xg - mean) * jax.lax.rsqrt(var + eps)).reshape(B, C, H, W)
    xn = xn * gamma[None, :, None, None] + beta[None, :, None, None]
    if scale_shift is not None:
        sc, sh = scale_shift
        xn = xn * (sc[:, :, None, None] + 1.0) + sh[:, :, None, None]
    a = xn * jax.nn.sigmoid(xn)
    y = jax.lax.conv_general_dilated(
        a, w_oihw, window_strides=(1, 1), padding="SAME",
        dimension_numbers=("NCHW", "OIHW", "NCHW"))
    return y + bias[None, :, None, None]


if __name__ == "__main__":
    B, C, H, W = 2, 16, 16, 16
    Cout, G = 32, 8

    key = jax.random.PRNGKey(0)
    kx, kg, kb, kw, kbi, ks, ksh = jax.random.split(key, 7)

    x = jax.random.normal(kx, (B, C, H, W), jnp.float32)
    gamma = 1.0 + 0.1 * jax.random.normal(kg, (C,), jnp.float32)
    beta = 0.1 * jax.random.normal(kb, (C,), jnp.float32)
    w = 0.1 * jax.random.normal(kw, (Cout, C, 3, 3), jnp.float32)
    bias = 0.05 * jax.random.normal(kbi, (Cout,), jnp.float32)
    scale = 0.2 * jax.random.normal(ks, (B, C), jnp.float32)
    shift = 0.2 * jax.random.normal(ksh, (B, C), jnp.float32)
    scale_shift = (scale, shift)

    # f32 path with scale_shift.
    out = block_forward(x, gamma, beta, w, bias, scale_shift, groups=G)
    out = jax.block_until_ready(out)
    ref = _reference_forward(x, gamma, beta, w, bias, scale_shift, groups=G)
    ref = jax.block_until_ready(ref)
    assert out.shape == (B, Cout, H, W), out.shape
    # Tolerance allows for the bf16 conv-matmul operands (f32 accumulation).
    assert jnp.allclose(out, ref, atol=3e-2, rtol=3e-2), (
        float(jnp.max(jnp.abs(out - ref))))

    # scale_shift=None path (PyTorch default call).
    out_none = jax.block_until_ready(
        block_forward(x, gamma, beta, w, bias, None, groups=G))
    ref_none = _reference_forward(x, gamma, beta, w, bias, None, groups=G)
    assert jnp.allclose(out_none, ref_none, atol=3e-2, rtol=3e-2)

    # bf16-I/O path (mem-bound HBM-byte saving when the network runs bf16).
    out_bf16 = jax.block_until_ready(
        block_forward(x.astype(jnp.bfloat16), gamma, beta, w, bias,
                      scale_shift, groups=G))
    assert out_bf16.dtype == jnp.bfloat16
    assert jnp.allclose(out_bf16.astype(jnp.float32), ref,
                        atol=1.5e-1, rtol=1.5e-1)

    print("KERNEL_OK")
</pallas_src>

<mosaic_0001>
module attributes {stable_mosaic.version = 11 : i64} {
  func.func @_block_kernel(%arg0: i32, %arg1: memref<1x16x256xf32, #tpu.memory_space<vmem>>, %arg2: memref<16x1xf32, #tpu.memory_space<vmem>>, %arg3: memref<16x1xf32, #tpu.memory_space<vmem>>, %arg4: memref<16x16xf32, #tpu.memory_space<vmem>>, %arg5: memref<4x256xf32, #tpu.memory_space<vmem>>, %arg6: memref<3x32x48xbf16, #tpu.memory_space<vmem>>, %arg7: memref<32x1xf32, #tpu.memory_space<vmem>>, %arg8: memref<1x16x1xf32, #tpu.memory_space<vmem>>, %arg9: memref<1x16x1xf32, #tpu.memory_space<vmem>>, %arg10: memref<1x32x256xf32, #tpu.memory_space<vmem>>) attributes {dimension_semantics = [#tpu.dimension_semantics<parallel>], iteration_bounds = array<i64: 2>, scalar_prefetch = 0 : i64, scratch_operands = 0 : i64, tpu.core_type = #tpu.core_type<tc>, window_params = [{transform_indices = @transform_0, window_bounds = array<i64: 1, 16, 256>}, {pipeline_mode = #tpu.pipeline_mode<synchronous>, transform_indices = @transform_1, window_bounds = array<i64: 16, 1>}, {pipeline_mode = #tpu.pipeline_mode<synchronous>, transform_indices = @transform_2, window_bounds = array<i64: 16, 1>}, {pipeline_mode = #tpu.pipeline_mode<synchronous>, transform_indices = @transform_3, window_bounds = array<i64: 16, 16>}, {pipeline_mode = #tpu.pipeline_mode<synchronous>, transform_indices = @transform_4, window_bounds = array<i64: 4, 256>}, {pipeline_mode = #tpu.pipeline_mode<synchronous>, transform_indices = @transform_5, window_bounds = array<i64: 3, 32, 48>}, {pipeline_mode = #tpu.pipeline_mode<synchronous>, transform_indices = @transform_6, window_bounds = array<i64: 32, 1>}, {transform_indices = @transform_7, window_bounds = array<i64: 1, 16, 1>}, {transform_indices = @transform_8, window_bounds = array<i64: 1, 16, 1>}, {transform_indices = @transform_9, window_bounds = array<i64: 1, 32, 256>}]} {
    %c0 = arith.constant 0 : index
    %c0_0 = arith.constant 0 : index
    %c0_1 = arith.constant 0 : index
    %0 = vector.load %arg1[%c0, %c0_0, %c0_1] : memref<1x16x256xf32, #tpu.memory_space<vmem>>, vector<1x16x256xf32>
    %1 = vector.shape_cast %0 : vector<1x16x256xf32> to vector<16x256xf32>
    %cst = arith.constant dense<0.000000e+00> : vector<16xf32>
    %2 = vector.multi_reduction <add>, %1, %cst [1] : vector<16x256xf32> to vector<16xf32>
    %3 = vector.shape_cast %2 : vector<16xf32> to vector<16x1xf32>
    %c0_2 = arith.constant 0 : index
    %c0_3 = arith.constant 0 : index
    %4 = vector.load %arg4[%c0_2, %c0_3] : memref<16x16xf32, #tpu.memory_space<vmem>>, vector<16x16xf32>
    %cst_4 = arith.constant dense<0.000000e+00> : vector<16x1xf32>
    %5 = tpu.matmul %4, %3, %cst_4 {dimension_numbers = #tpu.dot_dimension_numbers<[1], [0], [0], [1], [0, 0, 1, 1], [], []>, precision = #tpu.contract_precision<fp32>} : vector<16x16xf32>, vector<16x1xf32>, vector<16x1xf32> -> vector<16x1xf32>
    %cst_5 = arith.constant 0.001953125 : f32
    %6 = vector.broadcast %cst_5 : f32 to vector<16x1xf32>
    %7 = arith.mulf %5, %6 : vector<16x1xf32>
    %8 = vector.broadcast %7 : vector<16x1xf32> to vector<16x256xf32>
    %9 = arith.subf %1, %8 : vector<16x256xf32>
    %10 = arith.mulf %9, %9 : vector<16x256xf32>
    %cst_6 = arith.constant dense<0.000000e+00> : vector<16xf32>
    %11 = vector.multi_reduction <add>, %10, %cst_6 [1] : vector<16x256xf32> to vector<16xf32>
    %12 = vector.shape_cast %11 : vector<16xf32> to vector<16x1xf32>
    %c0_7 = arith.constant 0 : index
    %c0_8 = arith.constant 0 : index
    %13 = vector.load %arg4[%c0_7, %c0_8] : memref<16x16xf32, #tpu.memory_space<vmem>>, vector<16x16xf32>
    %cst_9 = arith.constant dense<0.000000e+00> : vector<16x1xf32>
    %14 = tpu.matmul %13, %12, %cst_9 {dimension_numbers = #tpu.dot_dimension_numbers<[1], [0], [0], [1], [0, 0, 1, 1], [], []>, precision = #tpu.contract_precision<fp32>} : vector<16x16xf32>, vector<16x1xf32>, vector<16x1xf32> -> vector<16x1xf32>
    %cst_10 = arith.constant 0.001953125 : f32
    %15 = vector.broadcast %cst_10 : f32 to vector<16x1xf32>
    %16 = arith.mulf %14, %15 : vector<16x1xf32>
    %cst_11 = arith.constant 9.99999974E-6 : f32
    %17 = vector.broadcast %cst_11 : f32 to vector<16x1xf32>
    %18 = arith.addf %16, %17 : vector<16x1xf32>
    %19 = math.rsqrt %18 : vector<16x1xf32>
    %c0_12 = arith.constant 0 : index
    %c0_13 = arith.constant 0 : index
    %20 = vector.load %arg2[%c0_12, %c0_13] : memref<16x1xf32, #tpu.memory_space<vmem>>, vector<16x1xf32>
    %21 = arith.mulf %19, %20 : vector<16x1xf32>
    %22 = vector.broadcast %21 : vector<16x1xf32> to vector<16x256xf32>
    %23 = arith.mulf %9, %22 : vector<16x256xf32>
    %c0_14 = arith.constant 0 : index
    %c0_15 = arith.constant 0 : index
    %24 = vector.load %arg3[%c0_14, %c0_15] : memref<16x1xf32, #tpu.memory_space<vmem>>, vector<16x1xf32>
    %25 = vector.broadcast %24 : vector<16x1xf32> to vector<16x256xf32>
    %26 = arith.addf %23, %25 : vector<16x256xf32>
    %c0_16 = arith.constant 0 : index
    %c0_17 = arith.constant 0 : index
    %c0_18 = arith.constant 0 : index
    %27 = vector.load %arg8[%c0_16, %c0_17, %c0_18] : memref<1x16x1xf32, #tpu.memory_space<vmem>>, vector<1x16x1xf32>
    %28 = vector.shape_cast %27 : vector<1x16x1xf32> to vector<16x1xf32>
    %cst_19 = arith.constant 1.000000e+00 : f32
    %29 = vector.broadcast %cst_19 : f32 to vector<16x1xf32>
    %30 = arith.addf %28, %29 : vector<16x1xf32>
    %31 = vector.broadcast %30 : vector<16x1xf32> to vector<16x256xf32>
    %32 = arith.mulf %26, %31 : vector<16x256xf32>
    %c0_20 = arith.constant 0 : index
    %c0_21 = arith.constant 0 : index
    %c0_22 = arith.constant 0 : index
    %33 = vector.load %arg9[%c0_20, %c0_21, %c0_22] : memref<1x16x1xf32, #tpu.memory_space<vmem>>, vector<1x16x1xf32>
    %34 = vector.shape_cast %33 : vector<1x16x1xf32> to vector<16x1xf32>
    %35 = vector.broadcast %34 : vector<16x1xf32> to vector<16x256xf32>
    %36 = arith.addf %32, %35 : vector<16x256xf32>
    %37 = arith.negf %36 : vector<16x256xf32>
    %38 = math.exp %37 : vector<16x256xf32>
    %cst_23 = arith.constant 1.000000e+00 : f32
    %39 = vector.broadcast %cst_23 : f32 to vector<16x256xf32>
    %40 = arith.addf %39, %38 : vector<16x256xf32>
    %41 = arith.divf %39, %40 : vector<16x256xf32>
    %42 = arith.mulf %36, %41 : vector<16x256xf32>
    %c0_24 = arith.constant 0 : index
    %c0_25 = arith.constant 0 : index
    %43 = vector.load %arg5[%c0_24, %c0_25] : memref<4x256xf32, #tpu.memory_space<vmem>>, vector<1x256xf32>
    %c1 = arith.constant 1 : index
    %c0_26 = arith.constant 0 : index
    %44 = vector.load %arg5[%c1, %c0_26] : memref<4x256xf32, #tpu.memory_space<vmem>>, vector<1x256xf32>
    %c2 = arith.constant 2 : index
    %c0_27 = arith.constant 0 : index
    %45 = vector.load %arg5[%c2, %c0_27] : memref<4x256xf32, #tpu.memory_space<vmem>>, vector<1x256xf32>
    %c3 = arith.constant 3 : index
    %c0_28 = arith.constant 0 : index
    %46 = vector.load %arg5[%c3, %c0_28] : memref<4x256xf32, #tpu.memory_space<vmem>>, vector<1x256xf32>
    %47 = vector.broadcast %43 : vector<1x256xf32> to vector<16x256xf32>
    %48 = arith.mulf %42, %47 : vector<16x256xf32>
    %c1_i32 = arith.constant 1 : i32
    %49 = tpu.dynamic_rotate %48 by %c1_i32 dim 1 : vector<16x256xf32>, i32 -> vector<16x256xf32>
    %50 = vector.broadcast %44 : vector<1x256xf32> to vector<16x256xf32>
    %51 = arith.mulf %42, %50 : vector<16x256xf32>
    %c255_i32 = arith.constant 255 : i32
    %52 = tpu.dynamic_rotate %51 by %c255_i32 dim 1 : vector<16x256xf32>, i32 -> vector<16x256xf32>
    %53 = tpu.concatenate %49, %42, %52 in 0 : vector<16x256xf32>, vector<16x256xf32>, vector<16x256xf32> -> vector<48x256xf32>
    %c1_29 = arith.constant 1 : index
    %c0_30 = arith.constant 0 : index
    %c0_31 = arith.constant 0 : index
    %54 = vector.load %arg6[%c1_29, %c0_30, %c0_31] : memref<3x32x48xbf16, #tpu.memory_space<vmem>>, vector<1x32x48xbf16>
    %55 = vector.shape_cast %54 : vector<1x32x48xbf16> to vector<32x48xbf16>
    %56 = arith.truncf %53 : vector<48x256xf32> to vector<48x256xbf16>
    %cst_32 = arith.constant dense<0.000000e+00> : vector<32x256xf32>
    %57 = tpu.matmul %55, %56, %cst_32 {dimension_numbers = #tpu.dot_dimension_numbers<[1], [0], [0], [1], [0, 0, 1, 1], [], []>} : vector<32x48xbf16>, vector<48x256xbf16>, vector<32x256xf32> -> vector<32x256xf32>
    %c16_i32 = arith.constant 16 : i32
    %58 = tpu.dynamic_rotate %53 by %c16_i32 dim 1 : vector<48x256xf32>, i32 -> vector<48x256xf32>
    %59 = vector.broadcast %45 : vector<1x256xf32> to vector<48x256xf32>
    %60 = arith.mulf %58, %59 : vector<48x256xf32>
    %c0_33 = arith.constant 0 : index
    %c0_34 = arith.constant 0 : index
    %c0_35 = arith.constant 0 : index
    %61 = vector.load %arg6[%c0_33, %c0_34, %c0_35] : memref<3x32x48xbf16, #tpu.memory_space<vmem>>, vector<1x32x48xbf16>
    %62 = vector.shape_cast %61 : vector<1x32x48xbf16> to vector<32x48xbf16>
    %63 = arith.truncf %60 : vector<48x256xf32> to vector<48x256xbf16>
    %cst_36 = arith.constant dense<0.000000e+00> : vector<32x256xf32>
    %64 = tpu.matmul %62, %63, %cst_36 {dimension_numbers = #tpu.dot_dimension_numbers<[1], [0], [0], [1], [0, 0, 1, 1], [], []>} : vector<32x48xbf16>, vector<48x256xbf16>, vector<32x256xf32> -> vector<32x256xf32>
    %65 = arith.addf %57, %64 : vector<32x256xf32>
    %c240_i32 = arith.constant 240 : i32
    %66 = tpu.dynamic_rotate %53 by %c240_i32 dim 1 : vector<48x256xf32>, i32 -> vector<48x256xf32>
    %67 = vector.broadcast %46 : vector<1x256xf32> to vector<48x256xf32>
    %68 = arith.mulf %66, %67 : vector<48x256xf32>
    %c2_37 = arith.constant 2 : index
    %c0_38 = arith.constant 0 : index
    %c0_39 = arith.constant 0 : index
    %69 = vector.load %arg6[%c2_37, %c0_38, %c0_39] : memref<3x32x48xbf16, #tpu.memory_space<vmem>>, vector<1x32x48xbf16>
    %70 = vector.shape_cast %69 : vector<1x32x48xbf16> to vector<32x48xbf16>
    %71 = arith.truncf %68 : vector<48x256xf32> to vector<48x256xbf16>
    %cst_40 = arith.constant dense<0.000000e+00> : vector<32x256xf32>
    %72 = tpu.matmul %70, %71, %cst_40 {dimension_numbers = #tpu.dot_dimension_numbers<[1], [0], [0], [1], [0, 0, 1, 1], [], []>} : vector<32x48xbf16>, vector<48x256xbf16>, vector<32x256xf32> -> vector<32x256xf32>
    %73 = arith.addf %65, %72 : vector<32x256xf32>
    %c0_41 = arith.constant 0 : index
    %c0_42 = arith.constant 0 : index
    %74 = vector.load %arg7[%c0_41, %c0_42] : memref<32x1xf32, #tpu.memory_space<vmem>>, vector<32x1xf32>
    %75 = vector.broadcast %74 : vector<32x1xf32> to vector<32x256xf32>
    %76 = arith.addf %73, %75 : vector<32x256xf32>
    %c0_43 = arith.constant 0 : index
    %c0_44 = arith.constant 0 : index
    %c0_45 = arith.constant 0 : index
    %77 = vector.load %arg10[%c0_43, %c0_44, %c0_45] : memref<1x32x256xf32, #tpu.memory_space<vmem>>, vector<1x32x256xf32>
    %78 = vector.shape_cast %77 : vector<1x32x256xf32> to vector<32x256xf32>
    %79 = vector.shape_cast %76 : vector<32x256xf32> to vector<1x32x256xf32>
    tpu.vector_store %arg10[%c0_43, %c0_44, %c0_45], %79 {strides = array<i32>} : memref<1x32x256xf32, #tpu.memory_space<vmem>>, vector<1x32x256xf32>,
    return
  }
  func.func @transform_0(%arg0: i32) -> (i32, i32, i32) {
    %c0_i32 = arith.constant 0 : i32
    %c0_i32_0 = arith.constant 0 : i32
    %c0_i32_1 = arith.constant 0 : i32
    return %arg0, %c0_i32, %c0_i32_0 : i32, i32, i32
  }
  func.func @transform_1(%arg0: i32) -> (i32, i32) {
    %c0_i32 = arith.constant 0 : i32
    %c0_i32_0 = arith.constant 0 : i32
    %c0_i32_1 = arith.constant 0 : i32
    return %c0_i32, %c0_i32_0 : i32, i32
  }
  func.func @transform_2(%arg0: i32) -> (i32, i32) {
    %c0_i32 = arith.constant 0 : i32
    %c0_i32_0 = arith.constant 0 : i32
    %c0_i32_1 = arith.constant 0 : i32
    return %c0_i32, %c0_i32_0 : i32, i32
  }
  func.func @transform_3(%arg0: i32) -> (i32, i32) {
    %c0_i32 = arith.constant 0 : i32
    %c0_i32_0 = arith.constant 0 : i32
    %c0_i32_1 = arith.constant 0 : i32
    return %c0_i32, %c0_i32_0 : i32, i32
  }
  func.func @transform_4(%arg0: i32) -> (i32, i32) {
    %c0_i32 = arith.constant 0 : i32
    %c0_i32_0 = arith.constant 0 : i32
    %c0_i32_1 = arith.constant 0 : i32
    return %c0_i32, %c0_i32_0 : i32, i32
  }
  func.func @transform_5(%arg0: i32) -> (i32, i32, i32) {
    %c0_i32 = arith.constant 0 : i32
    %c0_i32_0 = arith.constant 0 : i32
    %c0_i32_1 = arith.constant 0 : i32
    %c0_i32_2 = arith.constant 0 : i32
    return %c0_i32, %c0_i32_0, %c0_i32_1 : i32, i32, i32
  }
  func.func @transform_6(%arg0: i32) -> (i32, i32) {
    %c0_i32 = arith.constant 0 : i32
    %c0_i32_0 = arith.constant 0 : i32
    %c0_i32_1 = arith.constant 0 : i32
    return %c0_i32, %c0_i32_0 : i32, i32
  }
  func.func @transform_7(%arg0: i32) -> (i32, i32, i32) {
    %c0_i32 = arith.constant 0 : i32
    %c0_i32_0 = arith.constant 0 : i32
    %c0_i32_1 = arith.constant 0 : i32
    return %arg0, %c0_i32, %c0_i32_0 : i32, i32, i32
  }
  func.func @transform_8(%arg0: i32) -> (i32, i32, i32) {
    %c0_i32 = arith.constant 0 : i32
    %c0_i32_0 = arith.constant 0 : i32
    %c0_i32_1 = arith.constant 0 : i32
    return %arg0, %c0_i32, %c0_i32_0 : i32, i32, i32
  }
  func.func @transform_9(%arg0: i32) -> (i32, i32, i32) {
    %c0_i32 = arith.constant 0 : i32
    %c0_i32_0 = arith.constant 0 : i32
    %c0_i32_1 = arith.constant 0 : i32
    return %arg0, %c0_i32, %c0_i32_0 : i32, i32, i32
  }
}

</mosaic_0001>

<llo_original>
// kernel: tpu_custom_call.1
$region0: #{tpu_custom_call.1}
  #allocation0 [shape = 'u32[]', space=smem, size = 0x4, offset = 0x4, fixed_abs, tag = 'smem constant byte address 0x4 - core index']
  #allocation1 [shape = 'u32[144,128]{1,0:T(1,128)}', space=vmem, size = 0x12000, scoped, tag = 'internal scratch']
  %s0 = inlined_call_operand.vmem [shape: f32[2,16,256], index: 0, kind: input, shape index: {}]
  %s1 = inlined_call_operand.vmem [shape: f32[16,1], index: 1, kind: input, shape index: {}]
  %s2 = inlined_call_operand.vmem [shape: f32[16,1], index: 2, kind: input, shape index: {}]
  %s3 = inlined_call_operand.vmem [shape: f32[16,16], index: 3, kind: input, shape index: {}]
  %s4 = inlined_call_operand.vmem [shape: f32[4,256], index: 4, kind: input, shape index: {}]
  %s5 = inlined_call_operand.vmem [shape: bf16[3,32,48], index: 5, kind: input, shape index: {}]
  %s6 = inlined_call_operand.vmem [shape: f32[32,1], index: 6, kind: input, shape index: {}]
  %s7 = inlined_call_operand.vmem [shape: f32[2,16,1], index: 7, kind: input, shape index: {}]
  %s8 = inlined_call_operand.vmem [shape: f32[2,16,1], index: 8, kind: input, shape index: {}]
  %s9 = inlined_call_operand.hbm [shape: f32[2,32,256], index: 9, kind: output, shape index: {}]
  %s10 = sld [smem:[#allocation0]]
  $region69: #{tpu_custom_call.1} parent=0
    _
  %s12 = ssub.s32 1, %s10
  %s13 = scalar_select 0, %s12, %s10
  $region1: #{tpu_custom_call.1} parent=0
    #allocation2 [shape = 'u8[65536]{0}', space=vmem, size = 0x10000, scoped, tag = 'output window, operand 0']
    #allocation3 [shape = 's32[2]{0}', space=sflag, size = 0x8, scoped, tag = 'scoped memory for tpu_custom_call.1']
    %14 = vsyncpa [#allocation3], 0
    %s15 = scalar_lea.sflag [#allocation3], 1
    %16 = vsyncpa %s15, 0
    loop: start=0, step=1, limit=4
    $region2: #{tpu_custom_call.1} parent=1 // loop_pre_header
      _
    $region3: #{tpu_custom_call.1} parent=1 // loop_header
      %s18 = sphi 0, %s22
      %p19 = scmp.ge.s32.totalorder %s18, 4
      %s28 = sphi 0, %s30
      %s31 = sphi 0, %s28
      %s32 = sphi 0, %s31
      %s48 = sphi 0, %s32
      %s52 = sphi 0, %s52
      %s54 = sphi 0, %s52
      %s55 = sphi 0, %s54
      %s69 = sphi 0, %s55
      %s73 = sphi 0, %s73
      %s75 = sphi 0, %s73
      %s76 = sphi 0, %s75
      %s90 = sphi 0, %s76
      %s94 = sphi 0, %s94
      %s96 = sphi 0, %s94
      %s97 = sphi 0, %s96
      %s111 = sphi 0, %s97
      %s115 = sphi 0, %s115
      %s117 = sphi 0, %s115
      %s118 = sphi 0, %s117
      %s132 = sphi 0, %s118
      %s136 = sphi 0, %s136
      %s138 = sphi 0, %s136
      %s139 = sphi 0, %s138
      %s153 = sphi 0, %s139
      %s157 = sphi 0, %s157
      %s159 = sphi 0, %s157
      %s160 = sphi 0, %s159
      %s174 = sphi 0, %s160
      %s180 = sphi 0, %s182
      %s183 = sphi 0, %s180
      %s184 = sphi 0, %s183
      %s200 = sphi 0, %s184
      %s206 = sphi 0, %s208
      %s209 = sphi 0, %s206
      %s210 = sphi 0, %s209
      %s226 = sphi 0, %s210
      %s232 = sphi 0, %s234
      %s235 = sphi 0, %s232
      %s236 = sphi 0, %s235
      %s252 = sphi 0, %s236
    $region4: #{tpu_custom_call.1} parent=1 // loop_header_branch
      %21 = sbr.rel (%p19) target = $region8
    $region5: #{tpu_custom_call.1} parent=1 // loop_body
      %s23 = ssub.s32 %s18, 1
      %s24 = ssub.s32 %s18, 2
      %s25 = sadd.s32 %s18, 1
      %s26 = ssub.s32 %s18, %s25
      %p27 = scmp.eq.s32.totalorder %s26, 0
      %s29 = sadd.s32 %s28, 1
      %s30 = scalar_select %p27, %s28, %s29
      %p33 = pneg %p27
      %p34 = scmp.eq.s32.totalorder %s18, 1
      %p35 = por %p33, %p34
      %p36 = scmp.ne.s32.totalorder %s28, %s31
      %p37 = scmp.eq.s32.totalorder %s18, 0
      %p38 = por %p36, %p37
      %p39 = scmp.ne.s32.totalorder %s28, %s31
      %p40 = scmp.eq.s32.totalorder %s23, 1
      %p41 = por %p39, %p40
      %p42 = scmp.ne.s32.totalorder %s31, %s32
      %p43 = scmp.eq.s32.totalorder %s23, 0
      %p44 = por %p42, %p43
      %p45 = scmp.ne.s32.totalorder %s31, %s32
      %p46 = scmp.eq.s32.totalorder %s24, 1
      %p47 = por %p45, %p46
      %p49 = scmp.ne.s32.totalorder %s32, %s48
      %p50 = scmp.eq.s32.totalorder %s24, 0
      %p51 = por %p49, %p50
      %s53 = sadd.s32 %s52, 1
      %p56 = scmp.eq.s32.totalorder %s18, 1
      %p57 = scmp.ne.s32.totalorder %s52, %s54
      %p58 = scmp.eq.s32.totalorder %s18, 0
      %p59 = por %p57, %p58
      %p60 = scmp.ne.s32.totalorder %s52, %s54
      %p61 = scmp.eq.s32.totalorder %s23, 1
      %p62 = por %p60, %p61
      %p63 = scmp.ne.s32.totalorder %s54, %s55
      %p64 = scmp.eq.s32.totalorder %s23, 0
      %p65 = por %p63, %p64
      %p66 = scmp.ne.s32.totalorder %s54, %s55
      %p67 = scmp.eq.s32.totalorder %s24, 1
      %p68 = por %p66, %p67
      %p70 = scmp.ne.s32.totalorder %s55, %s69
      %p71 = scmp.eq.s32.totalorder %s24, 0
      %p72 = por %p70, %p71
      %s74 = sadd.s32 %s73, 1
      %p77 = scmp.eq.s32.totalorder %s18, 1
      %p78 = scmp.ne.s32.totalorder %s73, %s75
      %p79 = scmp.eq.s32.totalorder %s18, 0
      %p80 = por %p78, %p79
      %p81 = scmp.ne.s32.totalorder %s73, %s75
      %p82 = scmp.eq.s32.totalorder %s23, 1
      %p83 = por %p81, %p82
      %p84 = scmp.ne.s32.totalorder %s75, %s76
      %p85 = scmp.eq.s32.totalorder %s23, 0
      %p86 = por %p84, %p85
      %p87 = scmp.ne.s32.totalorder %s75, %s76
      %p88 = scmp.eq.s32.totalorder %s24, 1
      %p89 = por %p87, %p88
      %p91 = scmp.ne.s32.totalorder %s76, %s90
      %p92 = scmp.eq.s32.totalorder %s24, 0
      %p93 = por %p91, %p92
      %s95 = sadd.s32 %s94, 1
      %p98 = scmp.eq.s32.totalorder %s18, 1
      %p99 = scmp.ne.s32.totalorder %s94, %s96
      %p100 = scmp.eq.s32.totalorder %s18, 0
      %p101 = por %p99, %p100
      %p102 = scmp.ne.s32.totalorder %s94, %s96
      %p103 = scmp.eq.s32.totalorder %s23, 1
      %p104 = por %p102, %p103
      %p105 = scmp.ne.s32.totalorder %s96, %s97
      %p106 = scmp.eq.s32.totalorder %s23, 0
      %p107 = por %p105, %p106
      %p108 = scmp.ne.s32.totalorder %s96, %s97
      %p109 = scmp.eq.s32.totalorder %s24, 1
      %p110 = por %p108, %p109
      %p112 = scmp.ne.s32.totalorder %s97, %s111
      %p113 = scmp.eq.s32.totalorder %s24, 0
      %p114 = por %p112, %p113
      %s116 = sadd.s32 %s115, 1
      %p119 = scmp.eq.s32.totalorder %s18, 1
      %p120 = scmp.ne.s32.totalorder %s115, %s117
      %p121 = scmp.eq.s32.totalorder %s18, 0
      %p122 = por %p120, %p121
      %p123 = scmp.ne.s32.totalorder %s115, %s117
      %p124 = scmp.eq.s32.totalorder %s23, 1
      %p125 = por %p123, %p124
      %p126 = scmp.ne.s32.totalorder %s117, %s118
      %p127 = scmp.eq.s32.totalorder %s23, 0
      %p128 = por %p126, %p127
      %p129 = scmp.ne.s32.totalorder %s117, %s118
      %p130 = scmp.eq.s32.totalorder %s24, 1
      %p131 = por %p129, %p130
      %p133 = scmp.ne.s32.totalorder %s118, %s132
      %p134 = scmp.eq.s32.totalorder %s24, 0
      %p135 = por %p133, %p134
      %s137 = sadd.s32 %s136, 1
      %p140 = scmp.eq.s32.totalorder %s18, 1
      %p141 = scmp.ne.s32.totalorder %s136, %s138
      %p142 = scmp.eq.s32.totalorder %s18, 0
      %p143 = por %p141, %p142
      %p144 = scmp.ne.s32.totalorder %s136, %s138
      %p145 = scmp.eq.s32.totalorder %s23, 1
      %p146 = por %p144, %p145
      %p147 = scmp.ne.s32.totalorder %s138, %s139
      %p148 = scmp.eq.s32.totalorder %s23, 0
      %p149 = por %p147, %p148
      %p150 = scmp.ne.s32.totalorder %s138, %s139
      %p151 = scmp.eq.s32.totalorder %s24, 1
      %p152 = por %p150, %p151
      %p154 = scmp.ne.s32.totalorder %s139, %s153
      %p155 = scmp.eq.s32.totalorder %s24, 0
      %p156 = por %p154, %p155
      %s158 = sadd.s32 %s157, 1
      %p161 = scmp.eq.s32.totalorder %s18, 1
      %p162 = scmp.ne.s32.totalorder %s157, %s159
      %p163 = scmp.eq.s32.totalorder %s18, 0
      %p164 = por %p162, %p163
      %p165 = scmp.ne.s32.totalorder %s157, %s159
      %p166 = scmp.eq.s32.totalorder %s23, 1
      %p167 = por %p165, %p166
      %p168 = scmp.ne.s32.totalorder %s159, %s160
      %p169 = scmp.eq.s32.totalorder %s23, 0
      %p170 = por %p168, %p169
      %p171 = scmp.ne.s32.totalorder %s159, %s160
      %p172 = scmp.eq.s32.totalorder %s24, 1
      %p173 = por %p171, %p172
      %p175 = scmp.ne.s32.totalorder %s160, %s174
      %p176 = scmp.eq.s32.totalorder %s24, 0
      %p177 = por %p175, %p176
      %s178 = ssub.s32 %s18, %s25
      %p179 = scmp.eq.s32.totalorder %s178, 0
      %s181 = sadd.s32 %s180, 1
      %s182 = scalar_select %p179, %s180, %s181
      %p185 = pneg %p179
      %p186 = scmp.eq.s32.totalorder %s18, 1
      %p187 = por %p185, %p186
      %p188 = scmp.ne.s32.totalorder %s180, %s183
      %p189 = scmp.eq.s32.totalorder %s18, 0
      %p190 = por %p188, %p189
      %p191 = scmp.ne.s32.totalorder %s180, %s183
      %p192 = scmp.eq.s32.totalorder %s23, 1
      %p193 = por %p191, %p192
      %p194 = scmp.ne.s32.totalorder %s183, %s184
      %p195 = scmp.eq.s32.totalorder %s23, 0
      %p196 = por %p194, %p195
      %p197 = scmp.ne.s32.totalorder %s183, %s184
      %p198 = scmp.eq.s32.totalorder %s24, 1
      %p199 = por %p197, %p198
      %p201 = scmp.ne.s32.totalorder %s184, %s200
      %p202 = scmp.eq.s32.totalorder %s24, 0
      %p203 = por %p201, %p202
      %s204 = ssub.s32 %s18, %s25
      %p205 = scmp.eq.s32.totalorder %s204, 0
      %s207 = sadd.s32 %s206, 1
      %s208 = scalar_select %p205, %s206, %s207
      %p211 = pneg %p205
      %p212 = scmp.eq.s32.totalorder %s18, 1
      %p213 = por %p211, %p212
      %p214 = scmp.ne.s32.totalorder %s206, %s209
      %p215 = scmp.eq.s32.totalorder %s18, 0
      %p216 = por %p214, %p215
      %p217 = scmp.ne.s32.totalorder %s206, %s209
      %p218 = scmp.eq.s32.totalorder %s23, 1
      %p219 = por %p217, %p218
      %p220 = scmp.ne.s32.totalorder %s209, %s210
      %p221 = scmp.eq.s32.totalorder %s23, 0
      %p222 = por %p220, %p221
      %p223 = scmp.ne.s32.totalorder %s209, %s210
      %p224 = scmp.eq.s32.totalorder %s24, 1
      %p225 = por %p223, %p224
      %p227 = scmp.ne.s32.totalorder %s210, %s226
      %p228 = scmp.eq.s32.totalorder %s24, 0
      %p229 = por %p227, %p228
      %s230 = ssub.s32 %s18, %s25
      %p231 = scmp.eq.s32.totalorder %s230, 0
      %s233 = sadd.s32 %s232, 1
      %s234 = scalar_select %p231, %s232, %s233
      %p237 = pneg %p231
      %p238 = scmp.eq.s32.totalorder %s18, 1
      %p239 = por %p237, %p238
      %p240 = scmp.ne.s32.totalorder %s232, %s235
      %p241 = scmp.eq.s32.totalorder %s18, 0
      %p242 = por %p240, %p241
      %p243 = scmp.ne.s32.totalorder %s232, %s235
      %p244 = scmp.eq.s32.totalorder %s23, 1
      %p245 = por %p243, %p244
      %p246 = scmp.ne.s32.totalorder %s235, %s236
      %p247 = scmp.eq.s32.totalorder %s23, 0
      %p248 = por %p246, %p247
      %p249 = scmp.ne.s32.totalorder %s235, %s236
      %p250 = scmp.eq.s32.totalorder %s24, 1
      %p251 = por %p249, %p250
      %p253 = scmp.ne.s32.totalorder %s236, %s252
      %p254 = scmp.eq.s32.totalorder %s24, 0
      %p255 = por %p253, %p254
      %p256 = scmp.le.s32.totalorder 1, %s18
      %p257 = scmp.lt.s32.totalorder %s18, 3
      %p258 = pnand %p256, %p257
      %p259 = pneg %p258
      // Predicated region
      $region9: #{tpu_custom_call.1} parent=5 // pred_check
        _
      $region10: #{tpu_custom_call.1} parent=5 // pred_check_branch
        %261 = sbr.rel (%p258) target = $region12
      $region11: #{tpu_custom_call.1} parent=5 // pred_region
        %s262 = ssub.s32 %s18, 1
        // Predicated region
        $region13: #{tpu_custom_call.1} parent=11 // pred_check
          %p263 = pneg %p65
        $region14: #{tpu_custom_call.1} parent=11 // pred_check_branch
          %265 = sbr.rel (%p263) target = $region16
        $region15: #{tpu_custom_call.1} parent=11 // pred_region
          _
        $region16: #{tpu_custom_call.1} parent=11 // pred_fallthru
          _
        // Predicated region
        $region17: #{tpu_custom_call.1} parent=11 // pred_check
          %p266 = pneg %p86
        $region18: #{tpu_custom_call.1} parent=11 // pred_check_branch
          %268 = sbr.rel (%p266) target = $region20
        $region19: #{tpu_custom_call.1} parent=11 // pred_region
          _
        $region20: #{tpu_custom_call.1} parent=11 // pred_fallthru
          _
        // Predicated region
        $region21: #{tpu_custom_call.1} parent=11 // pred_check
          %p269 = pneg %p107
        $region22: #{tpu_custom_call.1} parent=11 // pred_check_branch
          %271 = sbr.rel (%p269) target = $region24
        $region23: #{tpu_custom_call.1} parent=11 // pred_region
          _
        $region24: #{tpu_custom_call.1} parent=11 // pred_fallthru
          _
        // Predicated region
        $region25: #{tpu_custom_call.1} parent=11 // pred_check
          %p272 = pneg %p128
        $region26: #{tpu_custom_call.1} parent=11 // pred_check_branch
          %274 = sbr.rel (%p272) target = $region28
        $region27: #{tpu_custom_call.1} parent=11 // pred_region
          _
        $region28: #{tpu_custom_call.1} parent=11 // pred_fallthru
          _
        // Predicated region
        $region29: #{tpu_custom_call.1} parent=11 // pred_check
          %p275 = pneg %p149
        $region30: #{tpu_custom_call.1} parent=11 // pred_check_branch
          %277 = sbr.rel (%p275) target = $region32
        $region31: #{tpu_custom_call.1} parent=11 // pred_region
          _
        $region32: #{tpu_custom_call.1} parent=11 // pred_fallthru
          _
        // Predicated region
        $region33: #{tpu_custom_call.1} parent=11 // pred_check
          %p278 = pneg %p170
        $region34: #{tpu_custom_call.1} parent=11 // pred_check_branch
          %280 = sbr.rel (%p278) target = $region36
        $region35: #{tpu_custom_call.1} parent=11 // pred_region
          _
        $region36: #{tpu_custom_call.1} parent=11 // pred_fallthru
          _
      $region12: #{tpu_custom_call.1} parent=5 // pred_fallthru
        _
      %p281 = scmp.lt.s32.totalorder %s18, 2
      // Predicated region
      $region37: #{tpu_custom_call.1} parent=5 // pred_check
        %p282 = pneg %p281
      $region38: #{tpu_custom_call.1} parent=5 // pred_check_branch
        %284 = sbr.rel (%p282) target = $region40
      $region39: #{tpu_custom_call.1} parent=5 // pred_region
        // Predicated region
        $region41: #{tpu_custom_call.1} parent=39 // pred_check
          %p285 = pneg %p38
        $region42: #{tpu_custom_call.1} parent=39 // pred_check_branch
          %287 = sbr.rel (%p285) target = $region44
        $region43: #{tpu_custom_call.1} parent=39 // pred_region
          %p288 = scmp.lt.s32.totalorder %s18, 1
          %s289 = scalar_select %p288, %s18, 1
          %s290 = smul.addr %s289, 4
          %s291 = smul.addr %s290, 8
          %s292 = scalar_lea.vmem %s0, %s291
        $region44: #{tpu_custom_call.1} parent=39 // pred_fallthru
          _
        // Predicated region
        $region45: #{tpu_custom_call.1} parent=39 // pred_check
          %p293 = pneg %p190
        $region46: #{tpu_custom_call.1} parent=39 // pred_check_branch
          %295 = sbr.rel (%p293) target = $region48
        $region47: #{tpu_custom_call.1} parent=39 // pred_region
          %p296 = scmp.lt.s32.totalorder %s18, 1
          %s297 = scalar_select %p296, %s18, 1
          %s298 = smul.addr %s297, 2
          %s299 = smul.addr %s298, 8
          %s300 = scalar_lea.vmem %s7, %s299
        $region48: #{tpu_custom_call.1} parent=39 // pred_fallthru
          _
        // Predicated region
        $region49: #{tpu_custom_call.1} parent=39 // pred_check
          %p301 = pneg %p216
        $region50: #{tpu_custom_call.1} parent=39 // pred_check_branch
          %303 = sbr.rel (%p301) target = $region52
        $region51: #{tpu_custom_call.1} parent=39 // pred_region
          %p304 = scmp.lt.s32.totalorder %s18, 1
          %s305 = scalar_select %p304, %s18, 1
          %s306 = smul.addr %s305, 2
          %s307 = smul.addr %s306, 8
          %s308 = scalar_lea.vmem %s8, %s307
        $region52: #{tpu_custom_call.1} parent=39 // pred_fallthru
          _
      $region40: #{tpu_custom_call.1} parent=5 // pred_fallthru
        _
      %p309 = scmp.le.s32.totalorder 1, %s18
      %p310 = scmp.lt.s32.totalorder %s18, 3
      %p311 = pnand %p309, %p310
      %p312 = pneg %p311
      // Predicated region
      $region53: #{tpu_custom_call.1} parent=5 // pred_check
        _
      $region54: #{tpu_custom_call.1} parent=5 // pred_check_branch
        %314 = sbr.rel (%p311) target = $region56
      $region55: #{tpu_custom_call.1} parent=5 // pred_region
        %s315 = ssub.s32 %s18, 1
        %p316 = scmp.lt.s32.totalorder %s23, 1
        %s317 = scalar_select %p316, %s23, 1
        %s318 = smul.addr %s317, 4
        %s319 = smul.addr %s318, 8
        %s320 = scalar_lea.vmem %s0, %s319
        %p321 = pneg %p44
        %p322 = pneg %p41
        %p323 = pneg %p65
        %p324 = pneg %p62
        %p325 = pneg %p86
        %p326 = pneg %p83
        %p327 = pneg %p107
        %p328 = pneg %p104
        %p329 = pneg %p128
        %p330 = pneg %p125
        %p331 = pneg %p149
        %p332 = pneg %p146
        %p333 = pneg %p170
        %p334 = pneg %p167
        %p335 = scmp.lt.s32.totalorder %s23, 1
        %s336 = scalar_select %p335, %s23, 1
        %s337 = smul.addr %s336, 2
        %s338 = smul.addr %s337, 8
        %s339 = scalar_lea.vmem %s7, %s338
        %p340 = pneg %p196
        %p341 = pneg %p193
        %p342 = scmp.lt.s32.totalorder %s23, 1
        %s343 = scalar_select %p342, %s23, 1
        %s344 = smul.addr %s343, 2
        %s345 = smul.addr %s344, 8
        %s346 = scalar_lea.vmem %s8, %s345
        %p347 = pneg %p222
        %p348 = pneg %p219
        %p349 = pneg %p248
        %p350 = pneg %p245
        %s351 = sand.u32 %s235, 1
        %s352 = scalar_lea.sflag [#allocation3], %s351
        %s353 = sand.u32 %s235, 1
        %s354 = smul.addr %s353, 64
        %s355 = scalar_lea.vmem [#allocation2], %s354
        %p356 = scmp.lt.s32.totalorder %s23, 1
        %s357 = scalar_select %p356, %s23, 1
        %s358 = smul.addr %s357, 4
        %s359 = smul.addr %s358, 8
        %s360 = scalar_lea.vmem %s0, %s359
        %p361 = scmp.lt.s32.totalorder %s23, 1
        %s362 = scalar_select %p361, %s23, 1
        %s363 = smul.addr %s362, 2
        %s364 = smul.addr %s363, 8
        %s365 = scalar_lea.vmem %s7, %s364
        %p366 = scmp.lt.s32.totalorder %s23, 1
        %s367 = scalar_select %p366, %s23, 1
        %s368 = smul.addr %s367, 2
        %s369 = smul.addr %s368, 8
        %s370 = scalar_lea.vmem %s8, %s369
        %v372 = vld [vmem:[%s360] sm:$0xff]
        %v373 = vld [vmem:[%s360 + $0x8] sm:$0xff]
        %v374 = vld [vmem:[%s360 + $0x10] sm:$0xff]
        %v375 = vld [vmem:[%s360 + $0x18] sm:$0xff]
        %v376 = vadd.f32 %v372, %v373
        %377 = vadd.xlane.f32.xlu0 %v376
        %v378 = vpop.xlane.xlu0 %377
        %v379 = vadd.f32 %v374, %v375
        %380 = vadd.xlane.f32.xlu0 %v379
        %v381 = vpop.xlane.xlu0 %380
        %v382 = vld [vmem:[%s3] sm:$0xff]
        %v383 = vld [vmem:[%s3 + $0x8] sm:$0xff]
        %vm384 = vcmask 130048
        %v386 = vsel %vm384, %v382, 0
        %v389 = vsel %vm384, %v383, 0
        %391 = vmatprep.subr.mxu0 0.0
        %v392 = vand.u32 %v378, 4294901760
        %393 = vmatpush1.msra.mxu0 %v392
        %394 = vmatprep.subr.mxu0 0.0
        %v395 = vand.u32 %v381, 4294901760
        %396 = vmatpush1.msra.mxu0 %v395
        %397 = vmatprep.subr.mxu0 0.0
        %398 = vmatpush1.msra.mxu0 0.0
        %399 = vmatprep.subr.mxu0 0.0
        %400 = vmatpush1.msra.mxu0 0.0
        %401 = vmatprep.subr.mxu0 0.0
        %402 = vmatpush1.msra.mxu0 0.0
        %403 = vmatprep.subr.mxu0 0.0
        %404 = vmatpush1.msra.mxu0 0.0
        %405 = vmatprep.subr.mxu0 0.0
        %406 = vmatpush1.msra.mxu0 0.0
        %407 = vmatprep.subr.mxu0 0.0
        %408 = vmatpush1.msra.mxu0 0.0
        %409 = vmatprep.subr.mxu0 0.0
        %410 = vmatpush1.msra.mxu0 0.0
        %411 = vmatprep.subr.mxu0 0.0
        %412 = vmatpush1.msra.mxu0 0.0
        %413 = vmatprep.subr.mxu0 0.0
        %414 = vmatpush1.msra.mxu0 0.0
        %415 = vmatprep.subr.mxu0 0.0
        %416 = vmatpush1.msra.mxu0 0.0
        %417 = vmatprep.subr.mxu0 0.0
        %418 = vmatpush1.msra.mxu0 0.0
        %419 = vmatprep.subr.mxu0 0.0
        %420 = vmatpush1.msra.mxu0 0.0
        %421 = vmatprep.subr.mxu0 0.0
        %422 = vmatpush1.msra.mxu0 0.0
        %423 = vmatprep.subr.mxu0 0.0
        %424 = vmatpush1.msra.mxu0 0.0
        %425 = vmatprep.subr.mxu0 0.0
        %426 = vmatpush1.msra.mxu0 0.0
        %427 = vmatprep.subr.mxu0 0.0
        %428 = vmatpush1.msra.mxu0 0.0
        %429 = vmatprep.subr.mxu0 0.0
        %430 = vmatpush1.msra.mxu0 0.0
        %431 = vmatprep.subr.mxu0 0.0
        %432 = vmatpush1.msra.mxu0 0.0
        %433 = vmatprep.subr.mxu0 0.0
        %434 = vmatpush1.msra.mxu0 0.0
        %435 = vmatprep.subr.mxu0 0.0
        %436 = vmatpush1.msra.mxu0 0.0
        %437 = vmatprep.subr.mxu0 0.0
        %438 = vmatpush1.msra.mxu0 0.0
        %439 = vmatprep.subr.mxu0 0.0
        %440 = vmatpush1.msra.mxu0 0.0
        %441 = vmatprep.subr.mxu0 0.0
        %442 = vmatpush1.msra.mxu0 0.0
        %443 = vmatprep.subr.mxu0 0.0
        %444 = vmatpush1.msra.mxu0 0.0
        %445 = vmatprep.subr.mxu0 0.0
        %446 = vmatpush1.msra.mxu0 0.0
        %447 = vmatprep.subr.mxu0 0.0
        %448 = vmatpush1.msra.mxu0 0.0
        %449 = vmatprep.subr.mxu0 0.0
        %450 = vmatpush1.msra.mxu0 0.0
        %451 = vmatprep.subr.mxu0 0.0
        %452 = vmatpush1.msra.mxu0 0.0
        %453 = vmatprep.subr.mxu0 0.0
        %454 = vmatpush1.msra.mxu0 0.0
        %455 = vmatprep.subr.mxu0 0.0
        %456 = vmatpush1.msra.mxu0 0.0
        %457 = vmatprep.mubr.f32.mxu0 0.0
        %v458 = vand.u32 %v386, 4294901760
        %v459 = vsub.f32 %v386, %v458
        %v460 = vand.u32 %v459, 4294901760
        %v461 = vsub.f32 %v459, %v460
        %v462 = vand.u32 %v461, 4294901760
        %463 = vmatmul.mubr.f32.gmra.mrb[0].mxu0 %v462
        %v464 = vpop.f32.mrb[0].mxu0
        %v465 = vadd.f32 0.0, %v464
        %v466 = vpop.f32.mrb[0].mxu0
        %467 = vmatprep.mubr.f32.mxu0 0.0
        %v468 = vand.u32 %v389, 4294901760
        %v469 = vsub.f32 %v389, %v468
        %v470 = vand.u32 %v469, 4294901760
        %v471 = vsub.f32 %v469, %v470
        %v472 = vand.u32 %v471, 4294901760
        %473 = vmatmul.mubr.f32.gmra.mrb[0].mxu0 %v472
        %v474 = vpop.f32.mrb[0].mxu0
        %v475 = vadd.f32 0.0, %v474
        %v476 = vpop.f32.mrb[0].mxu0
        %477 = vdwg.mxu0
        %478 = vmatprep.subr.mxu0 0.0
        %v479 = vand.u32 %v378, 4294901760
        %v480 = vsub.f32 %v378, %v479
        %v481 = vand.u32 %v480, 4294901760
        %v482 = vsub.f32 %v480, %v481
        %v483 = vand.u32 %v482, 4294901760
        %484 = vmatpush1.msra.mxu0 %v483
        %485 = vmatprep.subr.mxu0 0.0
        %v486 = vand.u32 %v381, 4294901760
        %v487 = vsub.f32 %v381, %v486
        %v488 = vand.u32 %v487, 4294901760
        %v489 = vsub.f32 %v487, %v488
        %v490 = vand.u32 %v489, 4294901760
        %491 = vmatpush1.msra.mxu0 %v490
        %492 = vmatprep.subr.mxu0 0.0
        %493 = vmatpush1.msra.mxu0 0.0
        %494 = vmatprep.subr.mxu0 0.0
        %495 = vmatpush1.msra.mxu0 0.0
        %496 = vmatprep.subr.mxu0 0.0
        %497 = vmatpush1.msra.mxu0 0.0
        %498 = vmatprep.subr.mxu0 0.0
        %499 = vmatpush1.msra.mxu0 0.0
        %500 = vmatprep.subr.mxu0 0.0
        %501 = vmatpush1.msra.mxu0 0.0
        %502 = vmatprep.subr.mxu0 0.0
        %503 = vmatpush1.msra.mxu0 0.0
        %504 = vmatprep.subr.mxu0 0.0
        %505 = vmatpush1.msra.mxu0 0.0
        %506 = vmatprep.subr.mxu0 0.0
        %507 = vmatpush1.msra.mxu0 0.0
        %508 = vmatprep.subr.mxu0 0.0
        %509 = vmatpush1.msra.mxu0 0.0
        %510 = vmatprep.subr.mxu0 0.0
        %511 = vmatpush1.msra.mxu0 0.0
        %512 = vmatprep.subr.mxu0 0.0
        %513 = vmatpush1.msra.mxu0 0.0
        %514 = vmatprep.subr.mxu0 0.0
        %515 = vmatpush1.msra.mxu0 0.0
        %516 = vmatprep.subr.mxu0 0.0
        %517 = vmatpush1.msra.mxu0 0.0
        %518 = vmatprep.subr.mxu0 0.0
        %519 = vmatpush1.msra.mxu0 0.0
        %520 = vmatprep.subr.mxu0 0.0
        %521 = vmatpush1.msra.mxu0 0.0
        %522 = vmatprep.subr.mxu0 0.0
        %523 = vmatpush1.msra.mxu0 0.0
        %524 = vmatprep.subr.mxu0 0.0
        %525 = vmatpush1.msra.mxu0 0.0
        %526 = vmatprep.subr.mxu0 0.0
        %527 = vmatpush1.msra.mxu0 0.0
        %528 = vmatprep.subr.mxu0 0.0
        %529 = vmatpush1.msra.mxu0 0.0
        %530 = vmatprep.subr.mxu0 0.0
        %531 = vmatpush1.msra.mxu0 0.0
        %532 = vmatprep.subr.mxu0 0.0
        %533 = vmatpush1.msra.mxu0 0.0
        %534 = vmatprep.subr.mxu0 0.0
        %535 = vmatpush1.msra.mxu0 0.0
        %536 = vmatprep.subr.mxu0 0.0
        %537 = vmatpush1.msra.mxu0 0.0
        %538 = vmatprep.subr.mxu0 0.0
        %539 = vmatpush1.msra.mxu0 0.0
        %540 = vmatprep.subr.mxu0 0.0
        %541 = vmatpush1.msra.mxu0 0.0
        %542 = vmatprep.subr.mxu0 0.0
        %543 = vmatpush1.msra.mxu0 0.0
        %544 = vmatprep.subr.mxu0 0.0
        %545 = vmatpush1.msra.mxu0 0.0
        %546 = vmatprep.subr.mxu0 0.0
        %547 = vmatpush1.msra.mxu0 0.0
        %548 = vmatprep.subr.mxu0 0.0
        %549 = vmatpush1.msra.mxu0 0.0
        %550 = vmatprep.subr.mxu0 0.0
        %551 = vmatpush1.msra.mxu0 0.0
        %552 = vmatprep.mubr.f32.mxu0 0.0
        %v553 = vand.u32 %v386, 4294901760
        %554 = vmatmul.mubr.f32.gmra.mrb[0].mxu0 %v553
        %v555 = vpop.f32.mrb[0].mxu0
        %v556 = vadd.f32 %v465, %v555
        %v557 = vpop.f32.mrb[0].mxu0
        %558 = vmatprep.mubr.f32.mxu0 0.0
        %v559 = vand.u32 %v389, 4294901760
        %560 = vmatmul.mubr.f32.gmra.mrb[0].mxu0 %v559
        %v561 = vpop.f32.mrb[0].mxu0
        %v562 = vadd.f32 %v475, %v561
        %v563 = vpop.f32.mrb[0].mxu0
        %564 = vdwg.mxu0
        %565 = vmatprep.subr.mxu0 0.0
        %v566 = vand.u32 %v378, 4294901760
        %v567 = vsub.f32 %v378, %v566
        %568 = vmatpush1.msra.mxu0 %v567
        %569 = vmatprep.subr.mxu0 0.0
        %v570 = vand.u32 %v381, 4294901760
        %v571 = vsub.f32 %v381, %v570
        %572 = vmatpush1.msra.mxu0 %v571
        %573 = vmatprep.subr.mxu0 0.0
        %574 = vmatpush1.msra.mxu0 0.0
        %575 = vmatprep.subr.mxu0 0.0
        %576 = vmatpush1.msra.mxu0 0.0
        %577 = vmatprep.subr.mxu0 0.0
        %578 = vmatpush1.msra.mxu0 0.0
        %579 = vmatprep.subr.mxu0 0.0
        %580 = vmatpush1.msra.mxu0 0.0
        %581 = vmatprep.subr.mxu0 0.0
        %582 = vmatpush1.msra.mxu0 0.0
        %583 = vmatprep.subr.mxu0 0.0
        %584 = vmatpush1.msra.mxu0 0.0
        %585 = vmatprep.subr.mxu0 0.0
        %586 = vmatpush1.msra.mxu0 0.0
        %587 = vmatprep.subr.mxu0 0.0
        %588 = vmatpush1.msra.mxu0 0.0
        %589 = vmatprep.subr.mxu0 0.0
        %590 = vmatpush1.msra.mxu0 0.0
        %591 = vmatprep.subr.mxu0 0.0
        %592 = vmatpush1.msra.mxu0 0.0
        %593 = vmatprep.subr.mxu0 0.0
        %594 = vmatpush1.msra.mxu0 0.0
        %595 = vmatprep.subr.mxu0 0.0
        %596 = vmatpush1.msra.mxu0 0.0
        %597 = vmatprep.subr.mxu0 0.0
        %598 = vmatpush1.msra.mxu0 0.0
        %599 = vmatprep.subr.mxu0 0.0
        %600 = vmatpush1.msra.mxu0 0.0
        %601 = vmatprep.subr.mxu0 0.0
        %602 = vmatpush1.msra.mxu0 0.0
        %603 = vmatprep.subr.mxu0 0.0
        %604 = vmatpush1.msra.mxu0 0.0
        %605 = vmatprep.subr.mxu0 0.0
        %606 = vmatpush1.msra.mxu0 0.0
        %607 = vmatprep.subr.mxu0 0.0
        %608 = vmatpush1.msra.mxu0 0.0
        %609 = vmatprep.subr.mxu0 0.0
        %610 = vmatpush1.msra.mxu0 0.0
        %611 = vmatprep.subr.mxu0 0.0
        %612 = vmatpush1.msra.mxu0 0.0
        %613 = vmatprep.subr.mxu0 0.0
        %614 = vmatpush1.msra.mxu0 0.0
        %615 = vmatprep.subr.mxu0 0.0
        %616 = vmatpush1.msra.mxu0 0.0
        %617 = vmatprep.subr.mxu0 0.0
        %618 = vmatpush1.msra.mxu0 0.0
        %619 = vmatprep.subr.mxu0 0.0
        %620 = vmatpush1.msra.mxu0 0.0
        %621 = vmatprep.subr.mxu0 0.0
        %622 = vmatpush1.msra.mxu0 0.0
        %623 = vmatprep.subr.mxu0 0.0
        %624 = vmatpush1.msra.mxu0 0.0
        %625 = vmatprep.subr.mxu0 0.0
        %626 = vmatpush1.msra.mxu0 0.0
        %627 = vmatprep.subr.mxu0 0.0
        %628 = vmatpush1.msra.mxu0 0.0
        %629 = vmatprep.subr.mxu0 0.0
        %630 = vmatpush1.msra.mxu0 0.0
        %631 = vmatprep.subr.mxu0 0.0
        %632 = vmatpush1.msra.mxu0 0.0
        %633 = vmatprep.mubr.f32.mxu0 0.0
        %v634 = vand.u32 %v386, 4294901760
        %v635 = vsub.f32 %v386, %v634
        %636 = vmatmul.mubr.f32.gmra.mrb[0].mxu0 %v635
        %v637 = vpop.f32.mrb[0].mxu0
        %v638 = vadd.f32 %v556, %v637
        %v639 = vpop.f32.mrb[0].mxu0
        %640 = vmatprep.mubr.f32.mxu0 0.0
        %v641 = vand.u32 %v389, 4294901760
        %v642 = vsub.f32 %v389, %v641
        %643 = vmatmul.mubr.f32.gmra.mrb[0].mxu0 %v642
        %v644 = vpop.f32.mrb[0].mxu0
        %v645 = vadd.f32 %v562, %v644
        %v646 = vpop.f32.mrb[0].mxu0
        %647 = vdwg.mxu0
        %648 = vmatprep.subr.mxu0 0.0
        %v649 = vand.u32 %v378, 4294901760
        %650 = vmatpush1.msra.mxu0 %v649
        %651 = vmatprep.subr.mxu0 0.0
        %v652 = vand.u32 %v381, 4294901760
        %653 = vmatpush1.msra.mxu0 %v652
        %654 = vmatprep.subr.mxu0 0.0
        %655 = vmatpush1.msra.mxu0 0.0
        %656 = vmatprep.subr.mxu0 0.0
        %657 = vmatpush1.msra.mxu0 0.0
        %658 = vmatprep.subr.mxu0 0.0
        %659 = vmatpush1.msra.mxu0 0.0
        %660 = vmatprep.subr.mxu0 0.0
        %661 = vmatpush1.msra.mxu0 0.0
        %662 = vmatprep.subr.mxu0 0.0
        %663 = vmatpush1.msra.mxu0 0.0
        %664 = vmatprep.subr.mxu0 0.0
        %665 = vmatpush1.msra.mxu0 0.0
        %666 = vmatprep.subr.mxu0 0.0
        %667 = vmatpush1.msra.mxu0 0.0
        %668 = vmatprep.subr.mxu0 0.0
        %669 = vmatpush1.msra.mxu0 0.0
        %670 = vmatprep.subr.mxu0 0.0
        %671 = vmatpush1.msra.mxu0 0.0
        %672 = vmatprep.subr.mxu0 0.0
        %673 = vmatpush1.msra.mxu0 0.0
        %674 = vmatprep.subr.mxu0 0.0
        %675 = vmatpush1.msra.mxu0 0.0
        %676 = vmatprep.subr.mxu0 0.0
        %677 = vmatpush1.msra.mxu0 0.0
        %678 = vmatprep.subr.mxu0 0.0
        %679 = vmatpush1.msra.mxu0 0.0
        %680 = vmatprep.subr.mxu0 0.0
        %681 = vmatpush1.msra.mxu0 0.0
        %682 = vmatprep.subr.mxu0 0.0
        %683 = vmatpush1.msra.mxu0 0.0
        %684 = vmatprep.subr.mxu0 0.0
        %685 = vmatpush1.msra.mxu0 0.0
        %686 = vmatprep.subr.mxu0 0.0
        %687 = vmatpush1.msra.mxu0 0.0
        %688 = vmatprep.subr.mxu0 0.0
        %689 = vmatpush1.msra.mxu0 0.0
        %690 = vmatprep.subr.mxu0 0.0
        %691 = vmatpush1.msra.mxu0 0.0
        %692 = vmatprep.subr.mxu0 0.0
        %693 = vmatpush1.msra.mxu0 0.0
        %694 = vmatprep.subr.mxu0 0.0
        %695 = vmatpush1.msra.mxu0 0.0
        %696 = vmatprep.subr.mxu0 0.0
        %697 = vmatpush1.msra.mxu0 0.0
        %698 = vmatprep.subr.mxu0 0.0
        %699 = vmatpush1.msra.mxu0 0.0
        %700 = vmatprep.subr.mxu0 0.0
        %701 = vmatpush1.msra.mxu0 0.0
        %702 = vmatprep.subr.mxu0 0.0
        %703 = vmatpush1.msra.mxu0 0.0
        %704 = vmatprep.subr.mxu0 0.0
        %705 = vmatpush1.msra.mxu0 0.0
        %706 = vmatprep.subr.mxu0 0.0
        %707 = vmatpush1.msra.mxu0 0.0
        %708 = vmatprep.subr.mxu0 0.0
        %709 = vmatpush1.msra.mxu0 0.0
        %710 = vmatprep.subr.mxu0 0.0
        %711 = vmatpush1.msra.mxu0 0.0
        %712 = vmatprep.subr.mxu0 0.0
        %713 = vmatpush1.msra.mxu0 0.0
        %714 = vmatprep.mubr.f32.mxu0 0.0
        %v715 = vand.u32 %v386, 4294901760
        %v716 = vsub.f32 %v386, %v715
        %v717 = vand.u32 %v716, 4294901760
        %718 = vmatmul.mubr.f32.gmra.mrb[0].mxu0 %v717
        %v719 = vpop.f32.mrb[0].mxu0
        %v720 = vadd.f32 %v638, %v719
        %v721 = vpop.f32.mrb[0].mxu0
        %722 = vmatprep.mubr.f32.mxu0 0.0
        %v723 = vand.u32 %v389, 4294901760
        %v724 = vsub.f32 %v389, %v723
        %v725 = vand.u32 %v724, 4294901760
        %726 = vmatmul.mubr.f32.gmra.mrb[0].mxu0 %v725
        %v727 = vpop.f32.mrb[0].mxu0
        %v728 = vadd.f32 %v645, %v727
        %v729 = vpop.f32.mrb[0].mxu0
        %730 = vdwg.mxu0
        %731 = vmatprep.subr.mxu0 0.0
        %v732 = vand.u32 %v378, 4294901760
        %v733 = vsub.f32 %v378, %v732
        %v734 = vand.u32 %v733, 4294901760
        %735 = vmatpush1.msra.mxu0 %v734
        %736 = vmatprep.subr.mxu0 0.0
        %v737 = vand.u32 %v381, 4294901760
        %v738 = vsub.f32 %v381, %v737
        %v739 = vand.u32 %v738, 4294901760
        %740 = vmatpush1.msra.mxu0 %v739
        %741 = vmatprep.subr.mxu0 0.0
        %742 = vmatpush1.msra.mxu0 0.0
        %743 = vmatprep.subr.mxu0 0.0
        %744 = vmatpush1.msra.mxu0 0.0
        %745 = vmatprep.subr.mxu0 0.0
        %746 = vmatpush1.msra.mxu0 0.0
        %747 = vmatprep.subr.mxu0 0.0
        %748 = vmatpush1.msra.mxu0 0.0
        %749 = vmatprep.subr.mxu0 0.0
        %750 = vmatpush1.msra.mxu0 0.0
        %751 = vmatprep.subr.mxu0 0.0
        %752 = vmatpush1.msra.mxu0 0.0
        %753 = vmatprep.subr.mxu0 0.0
        %754 = vmatpush1.msra.mxu0 0.0
        %755 = vmatprep.subr.mxu0 0.0
        %756 = vmatpush1.msra.mxu0 0.0
        %757 = vmatprep.subr.mxu0 0.0
        %758 = vmatpush1.msra.mxu0 0.0
        %759 = vmatprep.subr.mxu0 0.0
        %760 = vmatpush1.msra.mxu0 0.0
        %761 = vmatprep.subr.mxu0 0.0
        %762 = vmatpush1.msra.mxu0 0.0
        %763 = vmatprep.subr.mxu0 0.0
        %764 = vmatpush1.msra.mxu0 0.0
        %765 = vmatprep.subr.mxu0 0.0
        %766 = vmatpush1.msra.mxu0 0.0
        %767 = vmatprep.subr.mxu0 0.0
        %768 = vmatpush1.msra.mxu0 0.0
        %769 = vmatprep.subr.mxu0 0.0
        %770 = vmatpush1.msra.mxu0 0.0
        %771 = vmatprep.subr.mxu0 0.0
        %772 = vmatpush1.msra.mxu0 0.0
        %773 = vmatprep.subr.mxu0 0.0
        %774 = vmatpush1.msra.mxu0 0.0
        %775 = vmatprep.subr.mxu0 0.0
        %776 = vmatpush1.msra.mxu0 0.0
        %777 = vmatprep.subr.mxu0 0.0
        %778 = vmatpush1.msra.mxu0 0.0
        %779 = vmatprep.subr.mxu0 0.0
        %780 = vmatpush1.msra.mxu0 0.0
        %781 = vmatprep.subr.mxu0 0.0
        %782 = vmatpush1.msra.mxu0 0.0
        %783 = vmatprep.subr.mxu0 0.0
        %784 = vmatpush1.msra.mxu0 0.0
        %785 = vmatprep.subr.mxu0 0.0
        %786 = vmatpush1.msra.mxu0 0.0
        %787 = vmatprep.subr.mxu0 0.0
        %788 = vmatpush1.msra.mxu0 0.0
        %789 = vmatprep.subr.mxu0 0.0
        %790 = vmatpush1.msra.mxu0 0.0
        %791 = vmatprep.subr.mxu0 0.0
        %792 = vmatpush1.msra.mxu0 0.0
        %793 = vmatprep.subr.mxu0 0.0
        %794 = vmatpush1.msra.mxu0 0.0
        %795 = vmatprep.subr.mxu0 0.0
        %796 = vmatpush1.msra.mxu0 0.0
        %797 = vmatprep.subr.mxu0 0.0
        %798 = vmatpush1.msra.mxu0 0.0
        %799 = vmatprep.subr.mxu0 0.0
        %800 = vmatpush1.msra.mxu0 0.0
        %801 = vmatprep.mubr.f32.mxu0 0.0
        %v802 = vand.u32 %v386, 4294901760
        %803 = vmatmul.mubr.f32.gmra.mrb[0].mxu0 %v802
        %v804 = vpop.f32.mrb[0].mxu0
        %v805 = vadd.f32 %v720, %v804
        %v806 = vpop.f32.mrb[0].mxu0
        %807 = vmatprep.mubr.f32.mxu0 0.0
        %v808 = vand.u32 %v389, 4294901760
        %809 = vmatmul.mubr.f32.gmra.mrb[0].mxu0 %v808
        %v810 = vpop.f32.mrb[0].mxu0
        %v811 = vadd.f32 %v728, %v810
        %v812 = vpop.f32.mrb[0].mxu0
        %813 = vdwg.mxu0
        %814 = vmatprep.subr.mxu0 0.0
        %v815 = vand.u32 %v378, 4294901760
        %816 = vmatpush1.msra.mxu0 %v815
        %817 = vmatprep.subr.mxu0 0.0
        %v818 = vand.u32 %v381, 4294901760
        %819 = vmatpush1.msra.mxu0 %v818
        %820 = vmatprep.subr.mxu0 0.0
        %821 = vmatpush1.msra.mxu0 0.0
        %822 = vmatprep.subr.mxu0 0.0
        %823 = vmatpush1.msra.mxu0 0.0
        %824 = vmatprep.subr.mxu0 0.0
        %825 = vmatpush1.msra.mxu0 0.0
        %826 = vmatprep.subr.mxu0 0.0
        %827 = vmatpush1.msra.mxu0 0.0
        %828 = vmatprep.subr.mxu0 0.0
        %829 = vmatpush1.msra.mxu0 0.0
        %830 = vmatprep.subr.mxu0 0.0
        %831 = vmatpush1.msra.mxu0 0.0
        %832 = vmatprep.subr.mxu0 0.0
        %833 = vmatpush1.msra.mxu0 0.0
        %834 = vmatprep.subr.mxu0 0.0
        %835 = vmatpush1.msra.mxu0 0.0
        %836 = vmatprep.subr.mxu0 0.0
        %837 = vmatpush1.msra.mxu0 0.0
        %838 = vmatprep.subr.mxu0 0.0
        %839 = vmatpush1.msra.mxu0 0.0
        %840 = vmatprep.subr.mxu0 0.0
        %841 = vmatpush1.msra.mxu0 0.0
        %842 = vmatprep.subr.mxu0 0.0
        %843 = vmatpush1.msra.mxu0 0.0
        %844 = vmatprep.subr.mxu0 0.0
        %845 = vmatpush1.msra.mxu0 0.0
        %846 = vmatprep.subr.mxu0 0.0
        %847 = vmatpush1.msra.mxu0 0.0
        %848 = vmatprep.subr.mxu0 0.0
        %849 = vmatpush1.msra.mxu0 0.0
        %850 = vmatprep.subr.mxu0 0.0
        %851 = vmatpush1.msra.mxu0 0.0
        %852 = vmatprep.subr.mxu0 0.0
        %853 = vmatpush1.msra.mxu0 0.0
        %854 = vmatprep.subr.mxu0 0.0
        %855 = vmatpush1.msra.mxu0 0.0
        %856 = vmatprep.subr.mxu0 0.0
        %857 = vmatpush1.msra.mxu0 0.0
        %858 = vmatprep.subr.mxu0 0.0
        %859 = vmatpush1.msra.mxu0 0.0
        %860 = vmatprep.subr.mxu0 0.0
        %861 = vmatpush1.msra.mxu0 0.0
        %862 = vmatprep.subr.mxu0 0.0
        %863 = vmatpush1.msra.mxu0 0.0
        %864 = vmatprep.subr.mxu0 0.0
        %865 = vmatpush1.msra.mxu0 0.0
        %866 = vmatprep.subr.mxu0 0.0
        %867 = vmatpush1.msra.mxu0 0.0
        %868 = vmatprep.subr.mxu0 0.0
        %869 = vmatpush1.msra.mxu0 0.0
        %870 = vmatprep.subr.mxu0 0.0
        %871 = vmatpush1.msra.mxu0 0.0
        %872 = vmatprep.subr.mxu0 0.0
        %873 = vmatpush1.msra.mxu0 0.0
        %874 = vmatprep.subr.mxu0 0.0
        %875 = vmatpush1.msra.mxu0 0.0
        %876 = vmatprep.subr.mxu0 0.0
        %877 = vmatpush1.msra.mxu0 0.0
        %878 = vmatprep.subr.mxu0 0.0
        %879 = vmatpush1.msra.mxu0 0.0
        %880 = vmatprep.mubr.f32.mxu0 0.0
        %v881 = vand.u32 %v386, 4294901760
        %882 = vmatmul.mubr.f32.gmra.mrb[0].mxu0 %v881
        %v883 = vpop.f32.mrb[0].mxu0
        %v884 = vadd.f32 %v805, %v883
        %v885 = vpop.f32.mrb[0].mxu0
        %886 = vmatprep.mubr.f32.mxu0 0.0
        %v887 = vand.u32 %v389, 4294901760
        %888 = vmatmul.mubr.f32.gmra.mrb[0].mxu0 %v887
        %v889 = vpop.f32.mrb[0].mxu0
        %v890 = vadd.f32 %v811, %v889
        %v891 = vpop.f32.mrb[0].mxu0
        %892 = vdwg.mxu0
        %v893 = vmul.f32 %v884, 0.001953125
        %v894 = vmul.f32 %v890, 0.001953125
        %896 = vset.pattern.permute.xlu0 0
        %897 = vperm.xlu0 %896, %v893
        %v898 = vpop.permute.xlu0 %897
        %901 = vset.pattern.permute.xlu0 0
        %902 = vperm.xlu0 %901, %v894
        %v903 = vpop.permute.xlu0 %902
        %v905 = vsub.f32 %v372, %v898
        %v906 = vsub.f32 %v373, %v898
        %v907 = vsub.f32 %v374, %v903
        %v908 = vsub.f32 %v375, %v903
        %v909 = vmul.f32 %v905, %v905
        %v910 = vmul.f32 %v906, %v906
        %v911 = vmul.f32 %v907, %v907
        %v912 = vmul.f32 %v908, %v908
        %v913 = vadd.f32 %v909, %v910
        %914 = vadd.xlane.f32.xlu0 %v913
        %v915 = vpop.xlane.xlu0 %914
        %v916 = vadd.f32 %v911, %v912
        %917 = vadd.xlane.f32.xlu0 %v916
        %v918 = vpop.xlane.xlu0 %917
        %919 = vmatprep.subr.mxu0 0.0
        %v920 = vand.u32 %v915, 4294901760
        %921 = vmatpush1.msra.mxu0 %v920
        %922 = vmatprep.subr.mxu0 0.0
        %v923 = vand.u32 %v918, 4294901760
        %924 = vmatpush1.msra.mxu0 %v923
        %925 = vmatprep.subr.mxu0 0.0
        %926 = vmatpush1.msra.mxu0 0.0
        %927 = vmatprep.subr.mxu0 0.0
        %928 = vmatpush1.msra.mxu0 0.0
        %929 = vmatprep.subr.mxu0 0.0
        %930 = vmatpush1.msra.mxu0 0.0
        %931 = vmatprep.subr.mxu0 0.0
        %932 = vmatpush1.msra.mxu0 0.0
        %933 = vmatprep.subr.mxu0 0.0
        %934 = vmatpush1.msra.mxu0 0.0
        %935 = vmatprep.subr.mxu0 0.0
        %936 = vmatpush1.msra.mxu0 0.0
        %937 = vmatprep.subr.mxu0 0.0
        %938 = vmatpush1.msra.mxu0 0.0
        %939 = vmatprep.subr.mxu0 0.0
        %940 = vmatpush1.msra.mxu0 0.0
        %941 = vmatprep.subr.mxu0 0.0
        %942 = vmatpush1.msra.mxu0 0.0
        %943 = vmatprep.subr.mxu0 0.0
        %944 = vmatpush1.msra.mxu0 0.0
        %945 = vmatprep.subr.mxu0 0.0
        %946 = vmatpush1.msra.mxu0 0.0
        %947 = vmatprep.subr.mxu0 0.0
        %948 = vmatpush1.msra.mxu0 0.0
        %949 = vmatprep.subr.mxu0 0.0
        %950 = vmatpush1.msra.mxu0 0.0
        %951 = vmatprep.subr.mxu0 0.0
        %952 = vmatpush1.msra.mxu0 0.0
        %953 = vmatprep.subr.mxu0 0.0
        %954 = vmatpush1.msra.mxu0 0.0
        %955 = vmatprep.subr.mxu0 0.0
        %956 = vmatpush1.msra.mxu0 0.0
        %957 = vmatprep.subr.mxu0 0.0
        %958 = vmatpush1.msra.mxu0 0.0
        %959 = vmatprep.subr.mxu0 0.0
        %960 = vmatpush1.msra.mxu0 0.0
        %961 = vmatprep.subr.mxu0 0.0
        %962 = vmatpush1.msra.mxu0 0.0
        %963 = vmatprep.subr.mxu0 0.0
        %964 = vmatpush1.msra.mxu0 0.0
        %965 = vmatprep.subr.mxu0 0.0
        %966 = vmatpush1.msra.mxu0 0.0
        %967 = vmatprep.subr.mxu0 0.0
        %968 = vmatpush1.msra.mxu0 0.0
        %969 = vmatprep.subr.mxu0 0.0
        %970 = vmatpush1.msra.mxu0 0.0
        %971 = vmatprep.subr.mxu0 0.0
        %972 = vmatpush1.msra.mxu0 0.0
        %973 = vmatprep.subr.mxu0 0.0
        %974 = vmatpush1.msra.mxu0 0.0
        %975 = vmatprep.subr.mxu0 0.0
        %976 = vmatpush1.msra.mxu0 0.0
        %977 = vmatprep.subr.mxu0 0.0
        %978 = vmatpush1.msra.mxu0 0.0
        %979 = vmatprep.subr.mxu0 0.0
        %980 = vmatpush1.msra.mxu0 0.0
        %981 = vmatprep.subr.mxu0 0.0
        %982 = vmatpush1.msra.mxu0 0.0
        %983 = vmatprep.subr.mxu0 0.0
        %984 = vmatpush1.msra.mxu0 0.0
        %985 = vmatprep.mubr.f32.mxu0 0.0
        %v986 = vand.u32 %v386, 4294901760
        %v987 = vsub.f32 %v386, %v986
        %v988 = vand.u32 %v987, 4294901760
        %v989 = vsub.f32 %v987, %v988
        %v990 = vand.u32 %v989, 4294901760
        %991 = vmatmul.mubr.f32.gmra.mrb[0].mxu0 %v990
        %v992 = vpop.f32.mrb[0].mxu0
        %v993 = vadd.f32 0.0, %v992
        %v994 = vpop.f32.mrb[0].mxu0
        %995 = vmatprep.mubr.f32.mxu0 0.0
        %v996 = vand.u32 %v389, 4294901760
        %v997 = vsub.f32 %v389, %v996
        %v998 = vand.u32 %v997, 4294901760
        %v999 = vsub.f32 %v997, %v998
        %v1000 = vand.u32 %v999, 4294901760
        %1001 = vmatmul.mubr.f32.gmra.mrb[0].mxu0 %v1000
        %v1002 = vpop.f32.mrb[0].mxu0
        %v1003 = vadd.f32 0.0, %v1002
        %v1004 = vpop.f32.mrb[0].mxu0
        %1005 = vdwg.mxu0
        %1006 = vmatprep.subr.mxu0 0.0
        %v1007 = vand.u32 %v915, 4294901760
        %v1008 = vsub.f32 %v915, %v1007
        %v1009 = vand.u32 %v1008, 4294901760
        %v1010 = vsub.f32 %v1008, %v1009
        %v1011 = vand.u32 %v1010, 4294901760
        %1012 = vmatpush1.msra.mxu0 %v1011
        %1013 = vmatprep.subr.mxu0 0.0
        %v1014 = vand.u32 %v918, 4294901760
        %v1015 = vsub.f32 %v918, %v1014
        %v1016 = vand.u32 %v1015, 4294901760
        %v1017 = vsub.f32 %v1015, %v1016
        %v1018 = vand.u32 %v1017, 4294901760
        %1019 = vmatpush1.msra.mxu0 %v1018
        %1020 = vmatprep.subr.mxu0 0.0
        %1021 = vmatpush1.msra.mxu0 0.0
        %1022 = vmatprep.subr.mxu0 0.0
        %1023 = vmatpush1.msra.mxu0 0.0
        %1024 = vmatprep.subr.mxu0 0.0
        %1025 = vmatpush1.msra.mxu0 0.0
        %1026 = vmatprep.subr.mxu0 0.0
        %1027 = vmatpush1.msra.mxu0 0.0
        %1028 = vmatprep.subr.mxu0 0.0
        %1029 = vmatpush1.msra.mxu0 0.0
        %1030 = vmatprep.subr.mxu0 0.0
        %1031 = vmatpush1.msra.mxu0 0.0
        %1032 = vmatprep.subr.mxu0 0.0
        %1033 = vmatpush1.msra.mxu0 0.0
        %1034 = vmatprep.subr.mxu0 0.0
        %1035 = vmatpush1.msra.mxu0 0.0
        %1036 = vmatprep.subr.mxu0 0.0
        %1037 = vmatpush1.msra.mxu0 0.0
        %1038 = vmatprep.subr.mxu0 0.0
        %1039 = vmatpush1.msra.mxu0 0.0
        %1040 = vmatprep.subr.mxu0 0.0
        %1041 = vmatpush1.msra.mxu0 0.0
        %1042 = vmatprep.subr.mxu0 0.0
        %1043 = vmatpush1.msra.mxu0 0.0
        %1044 = vmatprep.subr.mxu0 0.0
        %1045 = vmatpush1.msra.mxu0 0.0
        %1046 = vmatprep.subr.mxu0 0.0
        %1047 = vmatpush1.msra.mxu0 0.0
        %1048 = vmatprep.subr.mxu0 0.0
        %1049 = vmatpush1.msra.mxu0 0.0
        %1050 = vmatprep.subr.mxu0 0.0
        %1051 = vmatpush1.msra.mxu0 0.0
        %1052 = vmatprep.subr.mxu0 0.0
        %1053 = vmatpush1.msra.mxu0 0.0
        %1054 = vmatprep.subr.mxu0 0.0
        %1055 = vmatpush1.msra.mxu0 0.0
        %1056 = vmatprep.subr.mxu0 0.0
        %1057 = vmatpush1.msra.mxu0 0.0
        %1058 = vmatprep.subr.mxu0 0.0
        %1059 = vmatpush1.msra.mxu0 0.0
        %1060 = vmatprep.subr.mxu0 0.0
        %1061 = vmatpush1.msra.mxu0 0.0
        %1062 = vmatprep.subr.mxu0 0.0
        %1063 = vmatpush1.msra.mxu0 0.0
        %1064 = vmatprep.subr.mxu0 0.0
        %1065 = vmatpush1.msra.mxu0 0.0
        %1066 = vmatprep.subr.mxu0 0.0
        %1067 = vmatpush1.msra.mxu0 0.0
        %1068 = vmatprep.subr.mxu0 0.0
        %1069 = vmatpush1.msra.mxu0 0.0
        %1070 = vmatprep.subr.mxu0 0.0
        %1071 = vmatpush1.msra.mxu0 0.0
        %1072 = vmatprep.subr.mxu0 0.0
        %1073 = vmatpush1.msra.mxu0 0.0
        %1074 = vmatprep.subr.mxu0 0.0
        %1075 = vmatpush1.msra.mxu0 0.0
        %1076 = vmatprep.subr.mxu0 0.0
        %1077 = vmatpush1.msra.mxu0 0.0
        %1078 = vmatprep.subr.mxu0 0.0
        %1079 = vmatpush1.msra.mxu0 0.0
        %1080 = vmatprep.mubr.f32.mxu0 0.0
        %v1081 = vand.u32 %v386, 4294901760
        %1082 = vmatmul.mubr.f32.gmra.mrb[0].mxu0 %v1081
        %v1083 = vpop.f32.mrb[0].mxu0
        %v1084 = vadd.f32 %v993, %v1083
        %v1085 = vpop.f32.mrb[0].mxu0
        %1086 = vmatprep.mubr.f32.mxu0 0.0
        %v1087 = vand.u32 %v389, 4294901760
        %1088 = vmatmul.mubr.f32.gmra.mrb[0].mxu0 %v1087
        %v1089 = vpop.f32.mrb[0].mxu0
        %v1090 = vadd.f32 %v1003, %v1089
        %v1091 = vpop.f32.mrb[0].mxu0
        %1092 = vdwg.mxu0
        %1093 = vmatprep.subr.mxu0 0.0
        %v1094 = vand.u32 %v915, 4294901760
        %v1095 = vsub.f32 %v915, %v1094
        %1096 = vmatpush1.msra.mxu0 %v1095
        %1097 = vmatprep.subr.mxu0 0.0
        %v1098 = vand.u32 %v918, 4294901760
        %v1099 = vsub.f32 %v918, %v1098
        %1100 = vmatpush1.msra.mxu0 %v1099
        %1101 = vmatprep.subr.mxu0 0.0
        %1102 = vmatpush1.msra.mxu0 0.0
        %1103 = vmatprep.subr.mxu0 0.0
        %1104 = vmatpush1.msra.mxu0 0.0
        %1105 = vmatprep.subr.mxu0 0.0
        %1106 = vmatpush1.msra.mxu0 0.0
        %1107 = vmatprep.subr.mxu0 0.0
        %1108 = vmatpush1.msra.mxu0 0.0
        %1109 = vmatprep.subr.mxu0 0.0
        %1110 = vmatpush1.msra.mxu0 0.0
        %1111 = vmatprep.subr.mxu0 0.0
        %1112 = vmatpush1.msra.mxu0 0.0
        %1113 = vmatprep.subr.mxu0 0.0
        %1114 = vmatpush1.msra.mxu0 0.0
        %1115 = vmatprep.subr.mxu0 0.0
        %1116 = vmatpush1.msra.mxu0 0.0
        %1117 = vmatprep.subr.mxu0 0.0
        %1118 = vmatpush1.msra.mxu0 0.0
        %1119 = vmatprep.subr.mxu0 0.0
        %1120 = vmatpush1.msra.mxu0 0.0
        %1121 = vmatprep.subr.mxu0 0.0
        %1122 = vmatpush1.msra.mxu0 0.0
        %1123 = vmatprep.subr.mxu0 0.0
        %1124 = vmatpush1.msra.mxu0 0.0
        %1125 = vmatprep.subr.mxu0 0.0
        %1126 = vmatpush1.msra.mxu0 0.0
        %1127 = vmatprep.subr.mxu0 0.0
        %1128 = vmatpush1.msra.mxu0 0.0
        %1129 = vmatprep.subr.mxu0 0.0
        %1130 = vmatpush1.msra.mxu0 0.0
        %1131 = vmatprep.subr.mxu0 0.0
        %1132 = vmatpush1.msra.mxu0 0.0
        %1133 = vmatprep.subr.mxu0 0.0
        %1134 = vmatpush1.msra.mxu0 0.0
        %1135 = vmatprep.subr.mxu0 0.0
        %1136 = vmatpush1.msra.mxu0 0.0
        %1137 = vmatprep.subr.mxu0 0.0
        %1138 = vmatpush1.msra.mxu0 0.0
        %1139 = vmatprep.subr.mxu0 0.0
        %1140 = vmatpush1.msra.mxu0 0.0
        %1141 = vmatprep.subr.mxu0 0.0
        %1142 = vmatpush1.msra.mxu0 0.0
        %1143 = vmatprep.subr.mxu0 0.0
        %1144 = vmatpush1.msra.mxu0 0.0
        %1145 = vmatprep.subr.mxu0 0.0
        %1146 = vmatpush1.msra.mxu0 0.0
        %1147 = vmatprep.subr.mxu0 0.0
        %1148 = vmatpush1.msra.mxu0 0.0
        %1149 = vmatprep.subr.mxu0 0.0
        %1150 = vmatpush1.msra.mxu0 0.0
        %1151 = vmatprep.subr.mxu0 0.0
        %1152 = vmatpush1.msra.mxu0 0.0
        %1153 = vmatprep.subr.mxu0 0.0
        %1154 = vmatpush1.msra.mxu0 0.0
        %1155 = vmatprep.subr.mxu0 0.0
        %1156 = vmatpush1.msra.mxu0 0.0
        %1157 = vmatprep.subr.mxu0 0.0
        %1158 = vmatpush1.msra.mxu0 0.0
        %1159 = vmatprep.subr.mxu0 0.0
        %1160 = vmatpush1.msra.mxu0 0.0
        %1161 = vmatprep.mubr.f32.mxu0 0.0
        %v1162 = vand.u32 %v386, 4294901760
        %v1163 = vsub.f32 %v386, %v1162
        %1164 = vmatmul.mubr.f32.gmra.mrb[0].mxu0 %v1163
        %v1165 = vpop.f32.mrb[0].mxu0
        %v1166 = vadd.f32 %v1084, %v1165
        %v1167 = vpop.f32.mrb[0].mxu0
        %1168 = vmatprep.mubr.f32.mxu0 0.0
        %v1169 = vand.u32 %v389, 4294901760
        %v1170 = vsub.f32 %v389, %v1169
        %1171 = vmatmul.mubr.f32.gmra.mrb[0].mxu0 %v1170
        %v1172 = vpop.f32.mrb[0].mxu0
        %v1173 = vadd.f32 %v1090, %v1172
        %v1174 = vpop.f32.mrb[0].mxu0
        %1175 = vdwg.mxu0
        %1176 = vmatprep.subr.mxu0 0.0
        %v1177 = vand.u32 %v915, 4294901760
        %1178 = vmatpush1.msra.mxu0 %v1177
        %1179 = vmatprep.subr.mxu0 0.0
        %v1180 = vand.u32 %v918, 4294901760
        %1181 = vmatpush1.msra.mxu0 %v1180
        %1182 = vmatprep.subr.mxu0 0.0
        %1183 = vmatpush1.msra.mxu0 0.0
        %1184 = vmatprep.subr.mxu0 0.0
        %1185 = vmatpush1.msra.mxu0 0.0
        %1186 = vmatprep.subr.mxu0 0.0
        %1187 = vmatpush1.msra.mxu0 0.0
        %1188 = vmatprep.subr.mxu0 0.0
        %1189 = vmatpush1.msra.mxu0 0.0
        %1190 = vmatprep.subr.mxu0 0.0
        %1191 = vmatpush1.msra.mxu0 0.0
        %1192 = vmatprep.subr.mxu0 0.0
        %1193 = vmatpush1.msra.mxu0 0.0
        %1194 = vmatprep.subr.mxu0 0.0
        %1195 = vmatpush1.msra.mxu0 0.0
        %1196 = vmatprep.subr.mxu0 0.0
        %1197 = vmatpush1.msra.mxu0 0.0
        %1198 = vmatprep.subr.mxu0 0.0
        %1199 = vmatpush1.msra.mxu0 0.0
        %1200 = vmatprep.subr.mxu0 0.0
        %1201 = vmatpush1.msra.mxu0 0.0
        %1202 = vmatprep.subr.mxu0 0.0
        %1203 = vmatpush1.msra.mxu0 0.0
        %1204 = vmatprep.subr.mxu0 0.0
        %1205 = vmatpush1.msra.mxu0 0.0
        %1206 = vmatprep.subr.mxu0 0.0
        %1207 = vmatpush1.msra.mxu0 0.0
        %1208 = vmatprep.subr.mxu0 0.0
        %1209 = vmatpush1.msra.mxu0 0.0
        %1210 = vmatprep.subr.mxu0 0.0
        %1211 = vmatpush1.msra.mxu0 0.0
        %1212 = vmatprep.subr.mxu0 0.0
        %1213 = vmatpush1.msra.mxu0 0.0
        %1214 = vmatprep.subr.mxu0 0.0
        %1215 = vmatpush1.msra.mxu0 0.0
        %1216 = vmatprep.subr.mxu0 0.0
        %1217 = vmatpush1.msra.mxu0 0.0
        %1218 = vmatprep.subr.mxu0 0.0
        %1219 = vmatpush1.msra.mxu0 0.0
        %1220 = vmatprep.subr.mxu0 0.0
        %1221 = vmatpush1.msra.mxu0 0.0
        %1222 = vmatprep.subr.mxu0 0.0
        %1223 = vmatpush1.msra.mxu0 0.0
        %1224 = vmatprep.subr.mxu0 0.0
        %1225 = vmatpush1.msra.mxu0 0.0
        %1226 = vmatprep.subr.mxu0 0.0
        %1227 = vmatpush1.msra.mxu0 0.0
        %1228 = vmatprep.subr.mxu0 0.0
        %1229 = vmatpush1.msra.mxu0 0.0
        %1230 = vmatprep.subr.mxu0 0.0
        %1231 = vmatpush1.msra.mxu0 0.0
        %1232 = vmatprep.subr.mxu0 0.0
        %1233 = vmatpush1.msra.mxu0 0.0
        %1234 = vmatprep.subr.mxu0 0.0
        %1235 = vmatpush1.msra.mxu0 0.0
        %1236 = vmatprep.subr.mxu0 0.0
        %1237 = vmatpush1.msra.mxu0 0.0
        %1238 = vmatprep.subr.mxu0 0.0
        %1239 = vmatpush1.msra.mxu0 0.0
        %1240 = vmatprep.subr.mxu0 0.0
        %1241 = vmatpush1.msra.mxu0 0.0
        %1242 = vmatprep.mubr.f32.mxu0 0.0
        %v1243 = vand.u32 %v386, 4294901760
        %v1244 = vsub.f32 %v386, %v1243
        %v1245 = vand.u32 %v1244, 4294901760
        %1246 = vmatmul.mubr.f32.gmra.mrb[0].mxu0 %v1245
        %v1247 = vpop.f32.mrb[0].mxu0
        %v1248 = vadd.f32 %v1166, %v1247
        %v1249 = vpop.f32.mrb[0].mxu0
        %1250 = vmatprep.mubr.f32.mxu0 0.0
        %v1251 = vand.u32 %v389, 4294901760
        %v1252 = vsub.f32 %v389, %v1251
        %v1253 = vand.u32 %v1252, 4294901760
        %1254 = vmatmul.mubr.f32.gmra.mrb[0].mxu0 %v1253
        %v1255 = vpop.f32.mrb[0].mxu0
        %v1256 = vadd.f32 %v1173, %v1255
        %v1257 = vpop.f32.mrb[0].mxu0
        %1258 = vdwg.mxu0
        %1259 = vmatprep.subr.mxu0 0.0
        %v1260 = vand.u32 %v915, 4294901760
        %v1261 = vsub.f32 %v915, %v1260
        %v1262 = vand.u32 %v1261, 4294901760
        %1263 = vmatpush1.msra.mxu0 %v1262
        %1264 = vmatprep.subr.mxu0 0.0
        %v1265 = vand.u32 %v918, 4294901760
        %v1266 = vsub.f32 %v918, %v1265
        %v1267 = vand.u32 %v1266, 4294901760
        %1268 = vmatpush1.msra.mxu0 %v1267
        %1269 = vmatprep.subr.mxu0 0.0
        %1270 = vmatpush1.msra.mxu0 0.0
        %1271 = vmatprep.subr.mxu0 0.0
        %1272 = vmatpush1.msra.mxu0 0.0
        %1273 = vmatprep.subr.mxu0 0.0
        %1274 = vmatpush1.msra.mxu0 0.0
        %1275 = vmatprep.subr.mxu0 0.0
        %1276 = vmatpush1.msra.mxu0 0.0
        %1277 = vmatprep.subr.mxu0 0.0
        %1278 = vmatpush1.msra.mxu0 0.0
        %1279 = vmatprep.subr.mxu0 0.0
        %1280 = vmatpush1.msra.mxu0 0.0
        %1281 = vmatprep.subr.mxu0 0.0
        %1282 = vmatpush1.msra.mxu0 0.0
        %1283 = vmatprep.subr.mxu0 0.0
        %1284 = vmatpush1.msra.mxu0 0.0
        %1285 = vmatprep.subr.mxu0 0.0
        %1286 = vmatpush1.msra.mxu0 0.0
        %1287 = vmatprep.subr.mxu0 0.0
        %1288 = vmatpush1.msra.mxu0 0.0
        %1289 = vmatprep.subr.mxu0 0.0
        %1290 = vmatpush1.msra.mxu0 0.0
        %1291 = vmatprep.subr.mxu0 0.0
        %1292 = vmatpush1.msra.mxu0 0.0
        %1293 = vmatprep.subr.mxu0 0.0
        %1294 = vmatpush1.msra.mxu0 0.0
        %1295 = vmatprep.subr.mxu0 0.0
        %1296 = vmatpush1.msra.mxu0 0.0
        %1297 = vmatprep.subr.mxu0 0.0
        %1298 = vmatpush1.msra.mxu0 0.0
        %1299 = vmatprep.subr.mxu0 0.0
        %1300 = vmatpush1.msra.mxu0 0.0
        %1301 = vmatprep.subr.mxu0 0.0
        %1302 = vmatpush1.msra.mxu0 0.0
        %1303 = vmatprep.subr.mxu0 0.0
        %1304 = vmatpush1.msra.mxu0 0.0
        %1305 = vmatprep.subr.mxu0 0.0
        %1306 = vmatpush1.msra.mxu0 0.0
        %1307 = vmatprep.subr.mxu0 0.0
        %1308 = vmatpush1.msra.mxu0 0.0
        %1309 = vmatprep.subr.mxu0 0.0
        %1310 = vmatpush1.msra.mxu0 0.0
        %1311 = vmatprep.subr.mxu0 0.0
        %1312 = vmatpush1.msra.mxu0 0.0
        %1313 = vmatprep.subr.mxu0 0.0
        %1314 = vmatpush1.msra.mxu0 0.0
        %1315 = vmatprep.subr.mxu0 0.0
        %1316 = vmatpush1.msra.mxu0 0.0
        %1317 = vmatprep.subr.mxu0 0.0
        %1318 = vmatpush1.msra.mxu0 0.0
        %1319 = vmatprep.subr.mxu0 0.0
        %1320 = vmatpush1.msra.mxu0 0.0
        %1321 = vmatprep.subr.mxu0 0.0
        %1322 = vmatpush1.msra.mxu0 0.0
        %1323 = vmatprep.subr.mxu0 0.0
        %1324 = vmatpush1.msra.mxu0 0.0
        %1325 = vmatprep.subr.mxu0 0.0
        %1326 = vmatpush1.msra.mxu0 0.0
        %1327 = vmatprep.subr.mxu0 0.0
        %1328 = vmatpush1.msra.mxu0 0.0
        %1329 = vmatprep.mubr.f32.mxu0 0.0
        %v1330 = vand.u32 %v386, 4294901760
        %1331 = vmatmul.mubr.f32.gmra.mrb[0].mxu0 %v1330
        %v1332 = vpop.f32.mrb[0].mxu0
        %v1333 = vadd.f32 %v1248, %v1332
        %v1334 = vpop.f32.mrb[0].mxu0
        %1335 = vmatprep.mubr.f32.mxu0 0.0
        %v1336 = vand.u32 %v389, 4294901760
        %1337 = vmatmul.mubr.f32.gmra.mrb[0].mxu0 %v1336
        %v1338 = vpop.f32.mrb[0].mxu0
        %v1339 = vadd.f32 %v1256, %v1338
        %v1340 = vpop.f32.mrb[0].mxu0
        %1341 = vdwg.mxu0
        %1342 = vmatprep.subr.mxu0 0.0
        %v1343 = vand.u32 %v915, 4294901760
        %1344 = vmatpush1.msra.mxu0 %v1343
        %1345 = vmatprep.subr.mxu0 0.0
        %v1346 = vand.u32 %v918, 4294901760
        %1347 = vmatpush1.msra.mxu0 %v1346
        %1348 = vmatprep.subr.mxu0 0.0
        %1349 = vmatpush1.msra.mxu0 0.0
        %1350 = vmatprep.subr.mxu0 0.0
        %1351 = vmatpush1.msra.mxu0 0.0
        %1352 = vmatprep.subr.mxu0 0.0
        %1353 = vmatpush1.msra.mxu0 0.0
        %1354 = vmatprep.subr.mxu0 0.0
        %1355 = vmatpush1.msra.mxu0 0.0
        %1356 = vmatprep.subr.mxu0 0.0
        %1357 = vmatpush1.msra.mxu0 0.0
        %1358 = vmatprep.subr.mxu0 0.0
        %1359 = vmatpush1.msra.mxu0 0.0
        %1360 = vmatprep.subr.mxu0 0.0
        %1361 = vmatpush1.msra.mxu0 0.0
        %1362 = vmatprep.subr.mxu0 0.0
        %1363 = vmatpush1.msra.mxu0 0.0
        %1364 = vmatprep.subr.mxu0 0.0
        %1365 = vmatpush1.msra.mxu0 0.0
        %1366 = vmatprep.subr.mxu0 0.0
        %1367 = vmatpush1.msra.mxu0 0.0
        %1368 = vmatprep.subr.mxu0 0.0
        %1369 = vmatpush1.msra.mxu0 0.0
        %1370 = vmatprep.subr.mxu0 0.0
        %1371 = vmatpush1.msra.mxu0 0.0
        %1372 = vmatprep.subr.mxu0 0.0
        %1373 = vmatpush1.msra.mxu0 0.0
        %1374 = vmatprep.subr.mxu0 0.0
        %1375 = vmatpush1.msra.mxu0 0.0
        %1376 = vmatprep.subr.mxu0 0.0
        %1377 = vmatpush1.msra.mxu0 0.0
        %1378 = vmatprep.subr.mxu0 0.0
        %1379 = vmatpush1.msra.mxu0 0.0
        %1380 = vmatprep.subr.mxu0 0.0
        %1381 = vmatpush1.msra.mxu0 0.0
        %1382 = vmatprep.subr.mxu0 0.0
        %1383 = vmatpush1.msra.mxu0 0.0
        %1384 = vmatprep.subr.mxu0 0.0
        %1385 = vmatpush1.msra.mxu0 0.0
        %1386 = vmatprep.subr.mxu0 0.0
        %1387 = vmatpush1.msra.mxu0 0.0
        %1388 = vmatprep.subr.mxu0 0.0
        %1389 = vmatpush1.msra.mxu0 0.0
        %1390 = vmatprep.subr.mxu0 0.0
        %1391 = vmatpush1.msra.mxu0 0.0
        %1392 = vmatprep.subr.mxu0 0.0
        %1393 = vmatpush1.msra.mxu0 0.0
        %1394 = vmatprep.subr.mxu0 0.0
        %1395 = vmatpush1.msra.mxu0 0.0
        %1396 = vmatprep.subr.mxu0 0.0
        %1397 = vmatpush1.msra.mxu0 0.0
        %1398 = vmatprep.subr.mxu0 0.0
        %1399 = vmatpush1.msra.mxu0 0.0
        %1400 = vmatprep.subr.mxu0 0.0
        %1401 = vmatpush1.msra.mxu0 0.0
        %1402 = vmatprep.subr.mxu0 0.0
        %1403 = vmatpush1.msra.mxu0 0.0
        %1404 = vmatprep.subr.mxu0 0.0
        %1405 = vmatpush1.msra.mxu0 0.0
        %1406 = vmatprep.subr.mxu0 0.0
        %1407 = vmatpush1.msra.mxu0 0.0
        %1408 = vmatprep.mubr.f32.mxu0 0.0
        %v1409 = vand.u32 %v386, 4294901760
        %1410 = vmatmul.mubr.f32.gmra.mrb[0].mxu0 %v1409
        %v1411 = vpop.f32.mrb[0].mxu0
        %v1412 = vadd.f32 %v1333, %v1411
        %v1413 = vpop.f32.mrb[0].mxu0
        %1414 = vmatprep.mubr.f32.mxu0 0.0
        %v1415 = vand.u32 %v389, 4294901760
        %1416 = vmatmul.mubr.f32.gmra.mrb[0].mxu0 %v1415
        %v1417 = vpop.f32.mrb[0].mxu0
        %v1418 = vadd.f32 %v1339, %v1417
        %v1419 = vpop.f32.mrb[0].mxu0
        %1420 = vdwg.mxu0
        %v1421 = vmul.f32 %v1412, 0.001953125
        %v1422 = vmul.f32 %v1418, 0.001953125
        %v1423 = vadd.f32 %v1421, 1e-05
        %v1424 = vadd.f32 %v1422, 1e-05
        %v1425 = vrsqrt.pop %v1423
        %v1426 = vrsqrt.pop %v1424
        %v1427 = vld [vmem:[%s1] sm:$0xff]
        %v1428 = vld [vmem:[%s1 + $0x8] sm:$0xff]
        %v1429 = vmul.f32 %v1425, %v1427
        %v1430 = vmul.f32 %v1426, %v1428
        %1432 = vset.pattern.permute.xlu0 0
        %1433 = vperm.xlu0 %1432, %v1429
        %v1434 = vpop.permute.xlu0 %1433
        %1437 = vset.pattern.permute.xlu0 0
        %1438 = vperm.xlu0 %1437, %v1430
        %v1439 = vpop.permute.xlu0 %1438
        %v1441 = vmul.f32 %v905, %v1434
        %v1442 = vmul.f32 %v906, %v1434
        %v1443 = vmul.f32 %v907, %v1439
        %v1444 = vmul.f32 %v908, %v1439
        %v1445 = vld [vmem:[%s2] sm:$0xff]
        %v1446 = vld [vmem:[%s2 + $0x8] sm:$0xff]
        %1448 = vset.pattern.permute.xlu0 0
        %1449 = vperm.xlu0 %1448, %v1445
        %v1450 = vpop.permute.xlu0 %1449
        %1453 = vset.pattern.permute.xlu0 0
        %1454 = vperm.xlu0 %1453, %v1446
        %v1455 = vpop.permute.xlu0 %1454
        %v1457 = vadd.f32 %v1441, %v1450
        %v1458 = vadd.f32 %v1442, %v1450
        %v1459 = vadd.f32 %v1443, %v1455
        %v1460 = vadd.f32 %v1444, %v1455
        %v1461 = vld [vmem:[%s365] sm:$0xff]
        %v1462 = vld [vmem:[%s365 + $0x8] sm:$0xff]
        %v1463 = vadd.f32 %v1461, 1.0
        %v1464 = vadd.f32 %v1462, 1.0
        %1466 = vset.pattern.permute.xlu0 0
        %1467 = vperm.xlu0 %1466, %v1463
        %v1468 = vpop.permute.xlu0 %1467
        %1471 = vset.pattern.permute.xlu0 0
        %1472 = vperm.xlu0 %1471, %v1464
        %v1473 = vpop.permute.xlu0 %1472
        %v1475 = vmul.f32 %v1457, %v1468
        %v1476 = vmul.f32 %v1458, %v1468
        %v1477 = vmul.f32 %v1459, %v1473
        %v1478 = vmul.f32 %v1460, %v1473
        %v1479 = vld [vmem:[%s370] sm:$0xff]
        %v1480 = vld [vmem:[%s370 + $0x8] sm:$0xff]
        %1482 = vset.pattern.permute.xlu0 0
        %1483 = vperm.xlu0 %1482, %v1479
        %v1484 = vpop.permute.xlu0 %1483
        %1487 = vset.pattern.permute.xlu0 0
        %1488 = vperm.xlu0 %1487, %v1480
        %v1489 = vpop.permute.xlu0 %1488
        %v1491 = vadd.f32 %v1475, %v1484
        %v1492 = vadd.f32 %v1476, %v1484
        %v1493 = vadd.f32 %v1477, %v1489
        %v1494 = vadd.f32 %v1478, %v1489
        %v1495 = vxor.u32 %v1491, 2147483648
        %v1496 = vxor.u32 %v1492, 2147483648
        %v1497 = vxor.u32 %v1493, 2147483648
        %v1498 = vxor.u32 %v1494, 2147483648
        %v1499 = vmul.f32 %v1495, 1.442695
        %v1500 = vpow.pop %v1499
        %v1501 = vmul.f32 %v1496, 1.442695
        %v1502 = vpow.pop %v1501
        %v1503 = vmul.f32 %v1497, 1.442695
        %v1504 = vpow.pop %v1503
        %v1505 = vmul.f32 %v1498, 1.442695
        %v1506 = vpow.pop %v1505
        %v1507 = vadd.f32 %v1500, 1.0
        %v1508 = vadd.f32 %v1502, 1.0
        %v1509 = vadd.f32 %v1504, 1.0
        %v1510 = vadd.f32 %v1506, 1.0
        %v1511 = vrcp.pop %v1507
        %v1512 = vmul.f32 1.0, %v1511
        %v1513 = vrcp.pop %v1508
        %v1514 = vmul.f32 1.0, %v1513
        %v1515 = vrcp.pop %v1509
        %v1516 = vmul.f32 1.0, %v1515
        %v1517 = vrcp.pop %v1510
        %v1518 = vmul.f32 1.0, %v1517
        %v1519 = vmul.f32 %v1491, %v1512
        %v1520 = vmul.f32 %v1492, %v1514
        %v1521 = vmul.f32 %v1493, %v1516
        %v1522 = vmul.f32 %v1494, %v1518
        %v1523 = vld [vmem:[%s4] ss:$4 sm:$0x3]
        %s1524 = scalar_lea.vmem %s4, 1
        %v1525 = vld [vmem:[%s1524] ss:$4 sm:$0x3]
        %s1526 = scalar_lea.vmem %s4, 2
        %v1527 = vld [vmem:[%s1526] ss:$4 sm:$0x3]
        %s1528 = scalar_lea.vmem %s4, 3
        %v1529 = vld [vmem:[%s1528] ss:$4 sm:$0x3]
        %v1531 = vlaneseq
        %v1532 = vshrl.u32 %v1531, 7
        %v1533 = vsub.s32 0, %v1532
        %v1534 = vrot.slane %v1523, %v1533
        %v1535 = vlaneseq
        %v1536 = vshrl.u32 %v1535, 7
        %v1537 = vsub.s32 1, %v1536
        %v1538 = vrot.slane %v1523, %v1537
        %v1541 = vmul.f32 %v1519, %v1534
        %v1542 = vmul.f32 %v1520, %v1538
        %v1543 = vmul.f32 %v1521, %v1534
        %v1544 = vmul.f32 %v1522, %v1538
        %1545 = vrot.lane.b32.xlu0 %v1541, 1
        %v1546 = vpop.permute.xlu0 %1545
        %1547 = vrot.lane.b32.xlu0 %v1543, 1
        %v1548 = vpop.permute.xlu0 %1547
        %1549 = vrot.lane.b32.xlu0 %v1542, 1
        %v1550 = vpop.permute.xlu0 %1549
        %1551 = vrot.lane.b32.xlu0 %v1544, 1
        %v1552 = vpop.permute.xlu0 %1551
        %v1553 = vlaneseq
        %v1554 = vand.u32 %v1553, 127
        %vm1555 = vcmp.lt.s32.totalorder %v1554, 1
        %v1556 = vsel %vm1555, %v1546, %v1550
        %v1557 = vsel %vm1555, %v1548, %v1552
        %v1558 = vsel %vm1555, %v1550, %v1546
        %v1559 = vsel %vm1555, %v1552, %v1548
        %v1561 = vlaneseq
        %v1562 = vshrl.u32 %v1561, 7
        %v1563 = vsub.s32 0, %v1562
        %v1564 = vrot.slane %v1525, %v1563
        %v1565 = vlaneseq
        %v1566 = vshrl.u32 %v1565, 7
        %v1567 = vsub.s32 1, %v1566
        %v1568 = vrot.slane %v1525, %v1567
        %v1571 = vmul.f32 %v1519, %v1564
        %v1572 = vmul.f32 %v1520, %v1568
        %v1573 = vmul.f32 %v1521, %v1564
        %v1574 = vmul.f32 %v1522, %v1568
        %1575 = vrot.lane.b32.xlu0 %v1571, 127
        %v1576 = vpop.permute.xlu0 %1575
        %1577 = vrot.lane.b32.xlu0 %v1573, 127
        %v1578 = vpop.permute.xlu0 %1577
        %1579 = vrot.lane.b32.xlu0 %v1572, 127
        %v1580 = vpop.permute.xlu0 %1579
        %1581 = vrot.lane.b32.xlu0 %v1574, 127
        %v1582 = vpop.permute.xlu0 %1581
        %vm1583 = vcmp.lt.s32.totalorder %v1554, 127
        %v1584 = vsel %vm1583, %v1576, %v1580
        %v1585 = vsel %vm1583, %v1578, %v1582
        %v1586 = vsel %vm1583, %v1580, %v1576
        %v1587 = vsel %vm1583, %v1582, %v1578
        %s1588 = scalar_lea.vmem %s5, 16
        %v1589 = vld [vmem:[%s1588] sm:$0xf]
        %v1590 = vld [vmem:[%s1588 + $0x4] sm:$0xf]
        %v1591 = vld [vmem:[%s1588 + $0x8] sm:$0xf]
        %v1592 = vld [vmem:[%s1588 + $0xc] sm:$0xf]
        %v1593 = vpack.c.bf16 %v1559, %v1558
        %v1594 = vpack.c.bf16 %v1557, %v1556
        %v1595 = vpack.c.bf16 %v1521, %v1519
        %v1596 = vpack.c.bf16 %v1522, %v1520
        %v1597 = vpack.c.bf16 %v1585, %v1584
        %v1598 = vpack.c.bf16 %v1587, %v1586
        %1599 = vrot.lane.b32.xlu0 %v1558, 16
        %v1600 = vpop.permute.xlu0 %1599
        %1601 = vrot.lane.b32.xlu0 %v1559, 16
        %v1602 = vpop.permute.xlu0 %1601
        %1603 = vrot.lane.b32.xlu0 %v1519, 16
        %v1604 = vpop.permute.xlu0 %1603
        %1605 = vrot.lane.b32.xlu0 %v1521, 16
        %v1606 = vpop.permute.xlu0 %1605
        %1607 = vrot.lane.b32.xlu0 %v1584, 16
        %v1608 = vpop.permute.xlu0 %1607
        %1609 = vrot.lane.b32.xlu0 %v1585, 16
        %v1610 = vpop.permute.xlu0 %1609
        %1611 = vrot.lane.b32.xlu0 %v1556, 16
        %v1612 = vpop.permute.xlu0 %1611
        %1613 = vrot.lane.b32.xlu0 %v1557, 16
        %v1614 = vpop.permute.xlu0 %1613
        %1615 = vrot.lane.b32.xlu0 %v1520, 16
        %v1616 = vpop.permute.xlu0 %1615
        %1617 = vrot.lane.b32.xlu0 %v1522, 16
        %v1618 = vpop.permute.xlu0 %1617
        %1619 = vrot.lane.b32.xlu0 %v1586, 16
        %v1620 = vpop.permute.xlu0 %1619
        %1621 = vrot.lane.b32.xlu0 %v1587, 16
        %v1622 = vpop.permute.xlu0 %1621
        %vm1623 = vcmp.lt.s32.totalorder %v1554, 16
        %v1624 = vsel %vm1623, %v1600, %v1612
        %v1625 = vsel %vm1623, %v1602, %v1614
        %v1626 = vsel %vm1623, %v1604, %v1616
        %v1627 = vsel %vm1623, %v1606, %v1618
        %v1628 = vsel %vm1623, %v1608, %v1620
        %v1629 = vsel %vm1623, %v1610, %v1622
        %v1630 = vsel %vm1623, %v1612, %v1600
        %v1631 = vsel %vm1623, %v1614, %v1602
        %v1632 = vsel %vm1623, %v1616, %v1604
        %v1633 = vsel %vm1623, %v1618, %v1606
        %v1634 = vsel %vm1623, %v1620, %v1608
        %v1635 = vsel %vm1623, %v1622, %v1610
        %v1637 = vlaneseq
        %v1638 = vshrl.u32 %v1637, 7
        %v1639 = vsub.s32 0, %v1638
        %v1640 = vrot.slane %v1527, %v1639
        %v1641 = vlaneseq
        %v1642 = vshrl.u32 %v1641, 7
        %v1643 = vsub.s32 1, %v1642
        %v1644 = vrot.slane %v1527, %v1643
        %v1647 = vmul.f32 %v1630, %v1640
        %v1648 = vmul.f32 %v1624, %v1644
        %v1649 = vmul.f32 %v1631, %v1640
        %v1650 = vmul.f32 %v1625, %v1644
        %v1651 = vmul.f32 %v1632, %v1640
        %v1652 = vmul.f32 %v1626, %v1644
        %v1653 = vmul.f32 %v1633, %v1640
        %v1654 = vmul.f32 %v1627, %v1644
        %v1655 = vmul.f32 %v1634, %v1640
        %v1656 = vmul.f32 %v1628, %v1644
        %v1657 = vmul.f32 %v1635, %v1640
        %v1658 = vmul.f32 %v1629, %v1644
        %v1659 = vld [vmem:[%s5] sm:$0xf]
        %v1660 = vld [vmem:[%s5 + $0x4] sm:$0xf]
        %v1661 = vld [vmem:[%s5 + $0x8] sm:$0xf]
        %v1662 = vld [vmem:[%s5 + $0xc] sm:$0xf]
        %v1663 = vpack.c.bf16 %v1649, %v1647
        %v1664 = vpack.c.bf16 %v1650, %v1648
        %v1665 = vpack.c.bf16 %v1653, %v1651
        %v1666 = vpack.c.bf16 %v1654, %v1652
        %v1667 = vpack.c.bf16 %v1657, %v1655
        %v1668 = vpack.c.bf16 %v1658, %v1656
        %v1673 = vunpack.c.l.b16 %v1659
        %v1674 = vunpack.c.l.b16 %v1660
        %v1675 = vunpack.c.l.b16 %v1661
        %v1676 = vunpack.c.l.b16 %v1662
        %v1677 = vpack.c.b16 %v1674, %v1673
        %v1678 = vpack.c.b16 %v1676, %v1675
        %vm1679 = vcmask 392192
        %v1681 = vsel %vm1679, %v1677, 0
        %v1684 = vsel %vm1679, %v1678, 0
        %1686 = vmatprep.subr.bf16.mxu0 %v1664
        %1687 = vmatpush1.bf16.msra.mxu0 %v1663
        %1688 = vmatprep.subr.bf16.mxu0 %v1666
        %1689 = vmatpush1.bf16.msra.mxu0 %v1665
        %1690 = vmatprep.subr.bf16.mxu0 %v1668
        %1691 = vmatpush1.bf16.msra.mxu0 %v1667
        %1692 = vmatprep.subr.bf16.mxu0 0
        %1693 = vmatpush1.bf16.msra.mxu0 0
        %1694 = vmatprep.subr.bf16.mxu0 0
        %1695 = vmatpush1.bf16.msra.mxu0 0
        %1696 = vmatprep.subr.bf16.mxu0 0
        %1697 = vmatpush1.bf16.msra.mxu0 0
        %1698 = vmatprep.subr.bf16.mxu0 0
        %1699 = vmatpush1.bf16.msra.mxu0 0
        %1700 = vmatprep.subr.bf16.mxu0 0
        %1701 = vmatpush1.bf16.msra.mxu0 0
        %1702 = vmatprep.subr.bf16.mxu0 0
        %1703 = vmatpush1.bf16.msra.mxu0 0
        %1704 = vmatprep.subr.bf16.mxu0 0
        %1705 = vmatpush1.bf16.msra.mxu0 0
        %1706 = vmatprep.subr.bf16.mxu0 0
        %1707 = vmatpush1.bf16.msra.mxu0 0
        %1708 = vmatprep.subr.bf16.mxu0 0
        %1709 = vmatpush1.bf16.msra.mxu0 0
        %1710 = vmatprep.subr.bf16.mxu0 0
        %1711 = vmatpush1.bf16.msra.mxu0 0
        %1712 = vmatprep.subr.bf16.mxu0 0
        %1713 = vmatpush1.bf16.msra.mxu0 0
        %1714 = vmatprep.subr.bf16.mxu0 0
        %1715 = vmatpush1.bf16.msra.mxu0 0
        %1716 = vmatprep.subr.bf16.mxu0 0
        %1717 = vmatpush1.bf16.msra.mxu0 0
        %1718 = vmatprep.mubr.bf16.mxu0 0
        %1719 = vmatmul.mubr.bf16.gmra.mrb[0].mxu0 %v1681
        %v1720 = vpop.f32.mrb[0].mxu0
        %v1721 = vadd.f32 0.0, %v1720
        %v1722 = vpop.f32.mrb[0].mxu0
        %v1723 = vadd.f32 0.0, %v1722
        %v1724 = vpop.f32.mrb[0].mxu0
        %v1725 = vadd.f32 0.0, %v1724
        %v1726 = vpop.f32.mrb[0].mxu0
        %v1727 = vadd.f32 0.0, %v1726
        %1728 = vmatprep.mubr.bf16.mxu0 0
        %1729 = vmatmul.mubr.bf16.gmra.mrb[0].mxu0 %v1684
        %v1730 = vpop.f32.mrb[0].mxu0
        %v1731 = vadd.f32 0.0, %v1730
        %v1732 = vpop.f32.mrb[0].mxu0
        %v1733 = vadd.f32 0.0, %v1732
        %v1734 = vpop.f32.mrb[0].mxu0
        %v1735 = vadd.f32 0.0, %v1734
        %v1736 = vpop.f32.mrb[0].mxu0
        %v1737 = vadd.f32 0.0, %v1736
        %1738 = vdwg.mxu0
        %v1743 = vunpack.c.l.b16 %v1589
        %v1744 = vunpack.c.l.b16 %v1590
        %v1745 = vunpack.c.l.b16 %v1591
        %v1746 = vunpack.c.l.b16 %v1592
        %v1747 = vpack.c.b16 %v1744, %v1743
        %v1748 = vpack.c.b16 %v1746, %v1745
        %v1750 = vsel %vm1679, %v1747, 0
        %v1753 = vsel %vm1679, %v1748, 0
        %1755 = vmatprep.subr.bf16.mxu0 %v1594
        %1756 = vmatpush1.bf16.msra.mxu0 %v1593
        %1757 = vmatprep.subr.bf16.mxu0 %v1596
        %1758 = vmatpush1.bf16.msra.mxu0 %v1595
        %1759 = vmatprep.subr.bf16.mxu0 %v1598
        %1760 = vmatpush1.bf16.msra.mxu0 %v1597
        %1761 = vmatprep.subr.bf16.mxu0 0
        %1762 = vmatpush1.bf16.msra.mxu0 0
        %1763 = vmatprep.subr.bf16.mxu0 0
        %1764 = vmatpush1.bf16.msra.mxu0 0
        %1765 = vmatprep.subr.bf16.mxu0 0
        %1766 = vmatpush1.bf16.msra.mxu0 0
        %1767 = vmatprep.subr.bf16.mxu0 0
        %1768 = vmatpush1.bf16.msra.mxu0 0
        %1769 = vmatprep.subr.bf16.mxu0 0
        %1770 = vmatpush1.bf16.msra.mxu0 0
        %1771 = vmatprep.subr.bf16.mxu0 0
        %1772 = vmatpush1.bf16.msra.mxu0 0
        %1773 = vmatprep.subr.bf16.mxu0 0
        %1774 = vmatpush1.bf16.msra.mxu0 0
        %1775 = vmatprep.subr.bf16.mxu0 0
        %1776 = vmatpush1.bf16.msra.mxu0 0
        %1777 = vmatprep.subr.bf16.mxu0 0
        %1778 = vmatpush1.bf16.msra.mxu0 0
        %1779 = vmatprep.subr.bf16.mxu0 0
        %1780 = vmatpush1.bf16.msra.mxu0 0
        %1781 = vmatprep.subr.bf16.mxu0 0
        %1782 = vmatpush1.bf16.msra.mxu0 0
        %1783 = vmatprep.subr.bf16.mxu0 0
        %1784 = vmatpush1.bf16.msra.mxu0 0
        %1785 = vmatprep.subr.bf16.mxu0 0
        %1786 = vmatpush1.bf16.msra.mxu0 0
        %1787 = vmatprep.mubr.bf16.mxu0 0
        %1788 = vmatmul.mubr.bf16.gmra.mrb[0].mxu0 %v1750
        %v1789 = vpop.f32.mrb[0].mxu0
        %v1790 = vadd.f32 %v1721, %v1789
        %v1791 = vpop.f32.mrb[0].mxu0
        %v1792 = vadd.f32 %v1723, %v1791
        %v1793 = vpop.f32.mrb[0].mxu0
        %v1794 = vadd.f32 %v1725, %v1793
        %v1795 = vpop.f32.mrb[0].mxu0
        %v1796 = vadd.f32 %v1727, %v1795
        %1797 = vmatprep.mubr.bf16.mxu0 0
        %1798 = vmatmul.mubr.bf16.gmra.mrb[0].mxu0 %v1753
        %v1799 = vpop.f32.mrb[0].mxu0
        %v1800 = vadd.f32 %v1731, %v1799
        %v1801 = vpop.f32.mrb[0].mxu0
        %v1802 = vadd.f32 %v1733, %v1801
        %v1803 = vpop.f32.mrb[0].mxu0
        %v1804 = vadd.f32 %v1735, %v1803
        %v1805 = vpop.f32.mrb[0].mxu0
        %v1806 = vadd.f32 %v1737, %v1805
        %1807 = vdwg.mxu0
        %1808 = vrot.lane.b32.xlu0 %v1558, 112
        %v1809 = vpop.permute.xlu0 %1808
        %1810 = vrot.lane.b32.xlu0 %v1559, 112
        %v1811 = vpop.permute.xlu0 %1810
        %1812 = vrot.lane.b32.xlu0 %v1519, 112
        %v1813 = vpop.permute.xlu0 %1812
        %1814 = vrot.lane.b32.xlu0 %v1521, 112
        %v1815 = vpop.permute.xlu0 %1814
        %1816 = vrot.lane.b32.xlu0 %v1584, 112
        %v1817 = vpop.permute.xlu0 %1816
        %1818 = vrot.lane.b32.xlu0 %v1585, 112
        %v1819 = vpop.permute.xlu0 %1818
        %1820 = vrot.lane.b32.xlu0 %v1556, 112
        %v1821 = vpop.permute.xlu0 %1820
        %1822 = vrot.lane.b32.xlu0 %v1557, 112
        %v1823 = vpop.permute.xlu0 %1822
        %1824 = vrot.lane.b32.xlu0 %v1520, 112
        %v1825 = vpop.permute.xlu0 %1824
        %1826 = vrot.lane.b32.xlu0 %v1522, 112
        %v1827 = vpop.permute.xlu0 %1826
        %1828 = vrot.lane.b32.xlu0 %v1586, 112
        %v1829 = vpop.permute.xlu0 %1828
        %1830 = vrot.lane.b32.xlu0 %v1587, 112
        %v1831 = vpop.permute.xlu0 %1830
        %vm1832 = vcmp.lt.s32.totalorder %v1554, 112
        %v1833 = vsel %vm1832, %v1809, %v1821
        %v1834 = vsel %vm1832, %v1811, %v1823
        %v1835 = vsel %vm1832, %v1813, %v1825
        %v1836 = vsel %vm1832, %v1815, %v1827
        %v1837 = vsel %vm1832, %v1817, %v1829
        %v1838 = vsel %vm1832, %v1819, %v1831
        %v1839 = vsel %vm1832, %v1821, %v1809
        %v1840 = vsel %vm1832, %v1823, %v1811
        %v1841 = vsel %vm1832, %v1825, %v1813
        %v1842 = vsel %vm1832, %v1827, %v1815
        %v1843 = vsel %vm1832, %v1829, %v1817
        %v1844 = vsel %vm1832, %v1831, %v1819
        %v1846 = vlaneseq
        %v1847 = vshrl.u32 %v1846, 7
        %v1848 = vsub.s32 0, %v1847
        %v1849 = vrot.slane %v1529, %v1848
        %v1850 = vlaneseq
        %v1851 = vshrl.u32 %v1850, 7
        %v1852 = vsub.s32 1, %v1851
        %v1853 = vrot.slane %v1529, %v1852
        %v1856 = vmul.f32 %v1833, %v1849
        %v1857 = vmul.f32 %v1839, %v1853
        %v1858 = vmul.f32 %v1834, %v1849
        %v1859 = vmul.f32 %v1840, %v1853
        %v1860 = vmul.f32 %v1835, %v1849
        %v1861 = vmul.f32 %v1841, %v1853
        %v1862 = vmul.f32 %v1836, %v1849
        %v1863 = vmul.f32 %v1842, %v1853
        %v1864 = vmul.f32 %v1837, %v1849
        %v1865 = vmul.f32 %v1843, %v1853
        %v1866 = vmul.f32 %v1838, %v1849
        %v1867 = vmul.f32 %v1844, %v1853
        %s1868 = scalar_lea.vmem %s5, 32
        %v1869 = vld [vmem:[%s1868] sm:$0xf]
        %v1870 = vld [vmem:[%s1868 + $0x4] sm:$0xf]
        %v1871 = vld [vmem:[%s1868 + $0x8] sm:$0xf]
        %v1872 = vld [vmem:[%s1868 + $0xc] sm:$0xf]
        %v1873 = vpack.c.bf16 %v1858, %v1856
        %v1874 = vpack.c.bf16 %v1859, %v1857
        %v1875 = vpack.c.bf16 %v1862, %v1860
        %v1876 = vpack.c.bf16 %v1863, %v1861
        %v1877 = vpack.c.bf16 %v1866, %v1864
        %v1878 = vpack.c.bf16 %v1867, %v1865
        %v1883 = vunpack.c.l.b16 %v1869
        %v1884 = vunpack.c.l.b16 %v1870
        %v1885 = vunpack.c.l.b16 %v1871
        %v1886 = vunpack.c.l.b16 %v1872
        %v1887 = vpack.c.b16 %v1884, %v1883
        %v1888 = vpack.c.b16 %v1886, %v1885
        %v1890 = vsel %vm1679, %v1887, 0
        %v1893 = vsel %vm1679, %v1888, 0
        %1895 = vmatprep.subr.bf16.mxu0 %v1874
        %1896 = vmatpush1.bf16.msra.mxu0 %v1873
        %1897 = vmatprep.subr.bf16.mxu0 %v1876
        %1898 = vmatpush1.bf16.msra.mxu0 %v1875
        %1899 = vmatprep.subr.bf16.mxu0 %v1878
        %1900 = vmatpush1.bf16.msra.mxu0 %v1877
        %1901 = vmatprep.subr.bf16.mxu0 0
        %1902 = vmatpush1.bf16.msra.mxu0 0
        %1903 = vmatprep.subr.bf16.mxu0 0
        %1904 = vmatpush1.bf16.msra.mxu0 0
        %1905 = vmatprep.subr.bf16.mxu0 0
        %1906 = vmatpush1.bf16.msra.mxu0 0
        %1907 = vmatprep.subr.bf16.mxu0 0
        %1908 = vmatpush1.bf16.msra.mxu0 0
        %1909 = vmatprep.subr.bf16.mxu0 0
        %1910 = vmatpush1.bf16.msra.mxu0 0
        %1911 = vmatprep.subr.bf16.mxu0 0
        %1912 = vmatpush1.bf16.msra.mxu0 0
        %1913 = vmatprep.subr.bf16.mxu0 0
        %1914 = vmatpush1.bf16.msra.mxu0 0
        %1915 = vmatprep.subr.bf16.mxu0 0
        %1916 = vmatpush1.bf16.msra.mxu0 0
        %1917 = vmatprep.subr.bf16.mxu0 0
        %1918 = vmatpush1.bf16.msra.mxu0 0
        %1919 = vmatprep.subr.bf16.mxu0 0
        %1920 = vmatpush1.bf16.msra.mxu0 0
        %1921 = vmatprep.subr.bf16.mxu0 0
        %1922 = vmatpush1.bf16.msra.mxu0 0
        %1923 = vmatprep.subr.bf16.mxu0 0
        %1924 = vmatpush1.bf16.msra.mxu0 0
        %1925 = vmatprep.subr.bf16.mxu0 0
        %1926 = vmatpush1.bf16.msra.mxu0 0
        %1927 = vmatprep.mubr.bf16.mxu0 0
        %1928 = vmatmul.mubr.bf16.gmra.mrb[0].mxu0 %v1890
        %v1929 = vpop.f32.mrb[0].mxu0
        %v1930 = vadd.f32 0.0, %v1929
        %v1931 = vpop.f32.mrb[0].mxu0
        %v1932 = vadd.f32 0.0, %v1931
        %v1933 = vpop.f32.mrb[0].mxu0
        %v1934 = vadd.f32 0.0, %v1933
        %v1935 = vpop.f32.mrb[0].mxu0
        %v1936 = vadd.f32 0.0, %v1935
        %1937 = vmatprep.mubr.bf16.mxu0 0
        %1938 = vmatmul.mubr.bf16.gmra.mrb[0].mxu0 %v1893
        %v1939 = vpop.f32.mrb[0].mxu0
        %v1940 = vadd.f32 0.0, %v1939
        %v1941 = vpop.f32.mrb[0].mxu0
        %v1942 = vadd.f32 0.0, %v1941
        %v1943 = vpop.f32.mrb[0].mxu0
        %v1944 = vadd.f32 0.0, %v1943
        %v1945 = vpop.f32.mrb[0].mxu0
        %v1946 = vadd.f32 0.0, %v1945
        %1947 = vdwg.mxu0
        %v1948 = vadd.f32 %v1790, %v1930
        %v1949 = vadd.f32 %v1792, %v1932
        %v1950 = vadd.f32 %v1794, %v1934
        %v1951 = vadd.f32 %v1796, %v1936
        %v1952 = vadd.f32 %v1800, %v1940
        %v1953 = vadd.f32 %v1802, %v1942
        %v1954 = vadd.f32 %v1804, %v1944
        %v1955 = vadd.f32 %v1806, %v1946
        %v1956 = vld [vmem:[%s6] sm:$0xff]
        %v1957 = vld [vmem:[%s6 + $0x8] sm:$0xff]
        %v1958 = vld [vmem:[%s6 + $0x10] sm:$0xff]
        %v1959 = vld [vmem:[%s6 + $0x18] sm:$0xff]
        %1961 = vset.pattern.permute.xlu0 0
        %1962 = vperm.xlu0 %1961, %v1956
        %v1963 = vpop.permute.xlu0 %1962
        %1966 = vset.pattern.permute.xlu0 0
        %1967 = vperm.xlu0 %1966, %v1957
        %v1968 = vpop.permute.xlu0 %1967
        %1971 = vset.pattern.permute.xlu0 0
        %1972 = vperm.xlu0 %1971, %v1958
        %v1973 = vpop.permute.xlu0 %1972
        %1976 = vset.pattern.permute.xlu0 0
        %1977 = vperm.xlu0 %1976, %v1959
        %v1978 = vpop.permute.xlu0 %1977
        %v1980 = vadd.f32 %v1948, %v1963
        %v1981 = vadd.f32 %v1949, %v1963
        %v1982 = vadd.f32 %v1950, %v1968
        %v1983 = vadd.f32 %v1951, %v1968
        %v1984 = vadd.f32 %v1952, %v1973
        %v1985 = vadd.f32 %v1953, %v1973
        %v1986 = vadd.f32 %v1954, %v1978
        %v1987 = vadd.f32 %v1955, %v1978
        %1988 = vst [vmem:[%s355] sm:$0xff] %v1980
        %1989 = vst [vmem:[%s355 + $0x8] sm:$0xff] %v1981
        %1990 = vst [vmem:[%s355 + $0x10] sm:$0xff] %v1982
        %1991 = vst [vmem:[%s355 + $0x18] sm:$0xff] %v1983
        %1992 = vst [vmem:[%s355 + $0x20] sm:$0xff] %v1984
        %1993 = vst [vmem:[%s355 + $0x28] sm:$0xff] %v1985
        %1994 = vst [vmem:[%s355 + $0x30] sm:$0xff] %v1986
        %1995 = vst [vmem:[%s355 + $0x38] sm:$0xff] %v1987
        %s1996 = sand.u32 %s235, 1
        %s1997 = scalar_lea.sflag [#allocation3], %s1996
        %s1998 = sand.u32 %s235, 1
        %s1999 = smul.addr %s1998, 64
        %s2000 = scalar_lea.vmem [#allocation2], %s1999
        // Predicated region
        $region57: #{tpu_custom_call.1} parent=55 // pred_check
          %p2001 = pneg %p245
        $region58: #{tpu_custom_call.1} parent=55 // pred_check_branch
          %2003 = sbr.rel (%p2001) target = $region60
        $region59: #{tpu_custom_call.1} parent=55 // pred_region
          %s2005 = ssub.s32 1024, 1024
          %2006 = vsyncadd %s1997, %s2005
          %s2007 = smul.addr %s23, 8
          %s2008 = smul.addr %s2007, 128
          %s2009 = scalar_lea.hbm %s9, %s2008
          %s2010 = sshll.u32 %s2000, 4
          %s2011 = int_to_ptr.vmem [resolvable:$true] %s2010
          %2016 = dma.vmem_to_hbm [thread:$0]  %s2011, 1024, %s2009, %s1997, 256, 256, 16
        $region60: #{tpu_custom_call.1} parent=55 // pred_fallthru
          _
      $region56: #{tpu_custom_call.1} parent=5 // pred_fallthru
        _
      %p2017 = scmp.le.s32.totalorder 2, %s18
      // Predicated region
      $region61: #{tpu_custom_call.1} parent=5 // pred_check
        %p2018 = pneg %p2017
      $region62: #{tpu_custom_call.1} parent=5 // pred_check_branch
        %2020 = sbr.rel (%p2018) target = $region64
      $region63: #{tpu_custom_call.1} parent=5 // pred_region
        %s2021 = ssub.s32 %s18, 2
        // Predicated region
        $region65: #{tpu_custom_call.1} parent=63 // pred_check
          %p2022 = pneg %p251
        $region66: #{tpu_custom_call.1} parent=63 // pred_check_branch
          %2024 = sbr.rel (%p2022) target = $region68
        $region67: #{tpu_custom_call.1} parent=63 // pred_region
          %s2025 = sand.u32 %s236, 1
          %s2026 = scalar_lea.sflag [#allocation3], %s2025
          %s2027 = sand.u32 %s236, 1
          %s2028 = smul.addr %s2027, 64
          %s2029 = scalar_lea.vmem [#allocation2], %s2028
          %2030 = dma.done %s2026, 1024
        $region68: #{tpu_custom_call.1} parent=63 // pred_fallthru
          _
      $region64: #{tpu_custom_call.1} parent=5 // pred_fallthru
        _
    $region6: #{tpu_custom_call.1} parent=1 // loop_footer
      %s22 = sadd.s32 1, %s18
    $region7: #{tpu_custom_call.1} parent=1 // loop_footer_branch
      %17 = sbr.rel target = $region3
    $region8: #{tpu_custom_call.1} parent=1 // loop_exit
      _
    %2031 = vsyncpa [#allocation3], 1
    %s2032 = scalar_lea.sflag [#allocation3], 1
    %2033 = vsyncpa %s2032, 1

</llo_original>
